<compile_context>
chip_gen: v7x
topology: tpu7x:2x2x1
jax: 0.10.0
libtpu: 0.0.40
codegen_flags: <defaults>
</compile_context>

<pallas_src>
import jax
import jax.numpy as jnp
from jax.experimental import pallas as pl
from jax.experimental.pallas import tpu as pltpu


def _lstm_recurrent_kernel(gx_ref, whh_ref, wfc_ref, bfc_ref, out_ref,
                           h_scr, c_scr):
    """One grid step processes a chunk of TC time steps.

    gx_ref : (TC, B_pad, 4*H_pad) f32  -- precomputed x @ W_ih^T + (b_ih+b_hh)
    whh_ref: (H_pad, 4*H_pad)     bf16 -- recurrent weights (pre-transposed)
    wfc_ref: (1, H_pad)           f32  -- fc weight row (output_dim == 1)
    bfc_ref: (1, 128)             f32  -- fc bias broadcast across lanes
    out_ref: (B_pad, 128)         f32  -- lane-dense output slab
    h_scr, c_scr: (B_pad, H_pad)  f32  -- state carried across chunks
    """
    chunk = pl.program_id(0)
    TC = gx_ref.shape[0]
    H = h_scr.shape[-1]          # padded hidden size (multiple of 128)

    @pl.when(chunk == 0)
    def _init():
        h_scr[...] = jnp.zeros_like(h_scr)
        c_scr[...] = jnp.zeros_like(c_scr)

    # Load the recurrent weight once per chunk (resident in VMEM anyway).
    whh = whh_ref[...]                                   # (H_pad, 4*H_pad) bf16

    def step(t, carry):
        h, c = carry
        # Only the recurrent matmul sits on the serial critical path.
        gates = gx_ref[t] + jnp.dot(h.astype(jnp.bfloat16), whh,
                                    preferred_element_type=jnp.float32)
        # Lane-aligned gate slices (each exactly H_pad = k*128 lanes wide).
        i = jax.nn.sigmoid(gates[:, 0 * H:1 * H])
        f = jax.nn.sigmoid(gates[:, 1 * H:2 * H])
        g = jnp.tanh(gates[:, 2 * H:3 * H])
        o = jax.nn.sigmoid(gates[:, 3 * H:4 * H])
        c_new = f * c + i * g
        h_new = o * jnp.tanh(c_new)
        return h_new, c_new

    # h/c live in vregs across the unrolled time steps; spill only here.
    h, c = jax.lax.fori_loop(0, TC, step, (h_scr[...], c_scr[...]), unroll=True)
    h_scr[...] = h
    c_scr[...] = c

    @pl.when(chunk == pl.num_programs(0) - 1)
    def _head():
        # output_dim == 1: VPU multiply + cross-lane reduce instead of an
        # N=1 MXU pass; write a lane-dense (B_pad, 128) slab (no masked vst).
        logits = jnp.sum(h * wfc_ref[...], axis=-1, keepdims=True)   # (B_pad, 1)
        out_ref[...] = jax.nn.sigmoid(logits + bfc_ref[...])         # (B_pad, 128)


def lstm_classifier_pallas(tokens, embedding, w_ih, w_hh, b_ih, b_hh, w_fc, b_fc,
                           *, time_chunk=None):
    """Forward pass of LSTMClassifier.  Returns (B, 1) probabilities."""
    B, T = tokens.shape
    E = embedding.shape[1]
    H = w_hh.shape[1]
    O = w_fc.shape[0]
    assert O == 1, "head reduce path assumes output_dim == 1"

    LANE, SUB = 128, 8
    B_pad = ((B + SUB - 1) // SUB) * SUB
    H_pad = ((H + LANE - 1) // LANE) * LANE
    GH = 4 * H_pad

    def pad_gate_cols(w):
        # (..., 4H) -> (..., 4*H_pad): zero-pad each of the [i,f,g,o] blocks
        # so every gate occupies a whole 128-lane group.
        parts = jnp.split(w, 4, axis=-1)
        pads = [(0, 0)] * (w.ndim - 1) + [(0, H_pad - H)]
        return jnp.concatenate([jnp.pad(p, pads) for p in parts], axis=-1)

    # ---- hoisted embedding gather + input projection (one big bf16 matmul) ----
    emb = embedding[tokens]                                      # (B, T, E) f32
    emb = jnp.pad(emb, ((0, B_pad - B), (0, 0), (0, 0)))         # pad batch
    x_flat = jnp.transpose(emb, (1, 0, 2)).reshape(T * B_pad, E)  # time-major

    w_ih_t = pad_gate_cols(w_ih.T)                               # (E, 4*H_pad)
    bias = pad_gate_cols((b_ih + b_hh)[None, :])                 # (1, 4*H_pad)

    gates_x = (jnp.dot(x_flat.astype(jnp.bfloat16),
                       w_ih_t.astype(jnp.bfloat16),
                       preferred_element_type=jnp.float32) + bias)
    gates_x = gates_x.reshape(T, B_pad, GH)                      # f32

    # ---- recurrent / head parameters ----
    w_hh_t = jnp.pad(w_hh.T, ((0, H_pad - H), (0, 0)))           # (H_pad, 4H)
    w_hh_t = pad_gate_cols(w_hh_t).astype(jnp.bfloat16)          # (H_pad, 4*H_pad)
    w_fc_row = jnp.pad(w_fc.reshape(1, H).astype(jnp.float32),
                       ((0, 0), (0, H_pad - H)))                 # (1, H_pad)
    b_fc_lanes = jnp.full((1, LANE), b_fc[0], jnp.float32)       # (1, 128)

    TC = T if time_chunk is None else time_chunk
    assert T % TC == 0
    n_chunks = T // TC

    # TODO(synk): for large batches on v7x, add a leading 'parallel' batch grid
    # axis so each TensorCore runs half the batch's recurrence.
    out_padded = pl.pallas_call(
        _lstm_recurrent_kernel,
        out_shape=jax.ShapeDtypeStruct((B_pad, LANE), jnp.float32),
        grid_spec=pltpu.PrefetchScalarGridSpec(
            num_scalar_prefetch=0,
            grid=(n_chunks,),
            in_specs=[
                pl.BlockSpec((TC, B_pad, GH), lambda t: (t, 0, 0)),   # gates_x chunk
                pl.BlockSpec((H_pad, GH), lambda t: (0, 0)),          # W_hh^T (resident)
                pl.BlockSpec((1, H_pad), lambda t: (0, 0)),           # W_fc row
                pl.BlockSpec((1, LANE), lambda t: (0, 0)),            # b_fc lanes
            ],
            out_specs=pl.BlockSpec((B_pad, LANE), lambda t: (0, 0)),
            scratch_shapes=[
                pltpu.VMEM((B_pad, H_pad), jnp.float32),   # h (across chunks)
                pltpu.VMEM((B_pad, H_pad), jnp.float32),   # c (across chunks)
            ],
        ),
        compiler_params=pltpu.CompilerParams(
            dimension_semantics=("arbitrary",),
            vmem_limit_bytes=32 * 1024 * 1024),
    )(gates_x, w_hh_t, w_fc_row, b_fc_lanes)

    return out_padded[:B, :O]


def reference_forward(tokens, embedding, w_ih, w_hh, b_ih, b_hh, w_fc, b_fc):
    """Pure-JAX f32 reference matching PyTorch LSTMClassifier.forward."""
    emb = embedding[tokens]                       # (B, T, E)
    B, T, E = emb.shape
    H = w_hh.shape[1]
    h = jnp.zeros((B, H), jnp.float32)
    c = jnp.zeros((B, H), jnp.float32)

    def step(carry, x_t):
        h, c = carry
        gates = x_t @ w_ih.T + b_ih + h @ w_hh.T + b_hh
        i = jax.nn.sigmoid(gates[:, 0 * H:1 * H])
        f = jax.nn.sigmoid(gates[:, 1 * H:2 * H])
        g = jnp.tanh(gates[:, 2 * H:3 * H])
        o = jax.nn.sigmoid(gates[:, 3 * H:4 * H])
        c = f * c + i * g
        h = o * jnp.tanh(c)
        return (h, c), None

    (h, c), _ = jax.lax.scan(step, (h, c), jnp.transpose(emb, (1, 0, 2)))
    return jax.nn.sigmoid(h @ w_fc.T + b_fc)


if __name__ == "__main__":
    # Small shapes consistent with the module.
    VOCAB, E, H, O = 50, 32, 32, 1
    B, T = 2, 8

    key = jax.random.PRNGKey(0)
    k_tok, k_emb, k_wih, k_whh, k_bih, k_bhh, k_wfc, k_bfc = jax.random.split(key, 8)

    tokens = jax.random.randint(k_tok, (B, T), 0, VOCAB, dtype=jnp.int32)

    # Deterministic synthetic parameters (PyTorch shapes).
    embedding = jax.random.normal(k_emb, (VOCAB, E), jnp.float32) * 0.1
    w_ih = jax.random.normal(k_wih, (4 * H, E), jnp.float32) * 0.1   # nn.LSTM weight_ih_l0
    w_hh = jax.random.normal(k_whh, (4 * H, H), jnp.float32) * 0.1   # nn.LSTM weight_hh_l0
    b_ih = jax.random.normal(k_bih, (4 * H,), jnp.float32) * 0.1
    b_hh = jax.random.normal(k_bhh, (4 * H,), jnp.float32) * 0.1
    w_fc = jax.random.normal(k_wfc, (O, H), jnp.float32) * 0.1       # nn.Linear weight
    b_fc = jax.random.normal(k_bfc, (O,), jnp.float32) * 0.1

    out = lstm_classifier_pallas(tokens, embedding, w_ih, w_hh, b_ih, b_hh, w_fc, b_fc)
    out = jax.block_until_ready(out)

    ref = reference_forward(tokens, embedding, w_ih, w_hh, b_ih, b_hh, w_fc, b_fc)
    assert out.shape == (B, O)
    # bf16 matmul operands (f32 accumulation) -> loosened tolerance vs f32 ref.
    assert jnp.allclose(out, ref, atol=2e-2, rtol=2e-2), (out, ref)

    print("KERNEL_OK")
</pallas_src>

<mosaic_0001>
module attributes {stable_mosaic.version = 11 : i64} {
  func.func @_lstm_recurrent_kernel(%arg0: i32, %arg1: memref<8x8x512xf32, #tpu.memory_space<vmem>>, %arg2: memref<128x512xbf16, #tpu.memory_space<vmem>>, %arg3: memref<1x128xf32, #tpu.memory_space<vmem>>, %arg4: memref<1x128xf32, #tpu.memory_space<vmem>>, %arg5: memref<8x128xf32, #tpu.memory_space<vmem>>, %arg6: memref<8x128xf32, #tpu.memory_space<vmem>>, %arg7: memref<8x128xf32, #tpu.memory_space<vmem>>) attributes {dimension_semantics = [#tpu.dimension_semantics<arbitrary>], iteration_bounds = array<i64: 1>, scalar_prefetch = 0 : i64, scratch_operands = 2 : i64, tpu.core_type = #tpu.core_type<tc>, window_params = [{transform_indices = @transform_0, window_bounds = array<i64: 8, 8, 512>}, {pipeline_mode = #tpu.pipeline_mode<synchronous>, transform_indices = @transform_1, window_bounds = array<i64: 128, 512>}, {pipeline_mode = #tpu.pipeline_mode<synchronous>, transform_indices = @transform_2, window_bounds = array<i64: 1, 128>}, {pipeline_mode = #tpu.pipeline_mode<synchronous>, transform_indices = @transform_3, window_bounds = array<i64: 1, 128>}, {pipeline_mode = #tpu.pipeline_mode<synchronous>, transform_indices = @transform_4, window_bounds = array<i64: 8, 128>}]} {
    %c0_i32 = arith.constant 0 : i32
    %0 = arith.cmpi eq, %arg0, %c0_i32 : i32
    %1 = arith.extui %0 : i1 to i32
    %c0_i32_0 = arith.constant 0 : i32
    %2 = arith.cmpi ne, %1, %c0_i32_0 : i32
    scf.if %2 {
      %cst_60 = arith.constant 0.000000e+00 : f32
      %259 = vector.broadcast %cst_60 : f32 to vector<8x128xf32>
      %c0_61 = arith.constant 0 : index
      %c0_62 = arith.constant 0 : index
      %260 = vector.load %arg6[%c0_61, %c0_62] : memref<8x128xf32, #tpu.memory_space<vmem>>, vector<8x128xf32>
      tpu.vector_store %arg6[%c0_61, %c0_62], %259 {strides = array<i32>} : memref<8x128xf32, #tpu.memory_space<vmem>>, vector<8x128xf32>,
      %cst_63 = arith.constant 0.000000e+00 : f32
      %261 = vector.broadcast %cst_63 : f32 to vector<8x128xf32>
      %c0_64 = arith.constant 0 : index
      %c0_65 = arith.constant 0 : index
      %262 = vector.load %arg7[%c0_64, %c0_65] : memref<8x128xf32, #tpu.memory_space<vmem>>, vector<8x128xf32>
      tpu.vector_store %arg7[%c0_64, %c0_65], %261 {strides = array<i32>} : memref<8x128xf32, #tpu.memory_space<vmem>>, vector<8x128xf32>,
    } else {
    }
    %c0 = arith.constant 0 : index
    %c0_1 = arith.constant 0 : index
    %3 = vector.load %arg2[%c0, %c0_1] : memref<128x512xbf16, #tpu.memory_space<vmem>>, vector<128x512xbf16>
    %c0_2 = arith.constant 0 : index
    %c0_3 = arith.constant 0 : index
    %4 = vector.load %arg6[%c0_2, %c0_3] : memref<8x128xf32, #tpu.memory_space<vmem>>, vector<8x128xf32>
    %c0_4 = arith.constant 0 : index
    %c0_5 = arith.constant 0 : index
    %5 = vector.load %arg7[%c0_4, %c0_5] : memref<8x128xf32, #tpu.memory_space<vmem>>, vector<8x128xf32>
    %c0_i32_6 = arith.constant 0 : i32
    %6 = arith.index_cast %c0_i32_6 : i32 to index
    %c0_7 = arith.constant 0 : index
    %c0_8 = arith.constant 0 : index
    %7 = vector.load %arg1[%6, %c0_7, %c0_8] : memref<8x8x512xf32, #tpu.memory_space<vmem>>, vector<1x8x512xf32>
    %8 = vector.shape_cast %7 : vector<1x8x512xf32> to vector<8x512xf32>
    %9 = arith.truncf %4 : vector<8x128xf32> to vector<8x128xbf16>
    %cst = arith.constant dense<0.000000e+00> : vector<8x512xf32>
    %10 = tpu.matmul %9, %3, %cst {dimension_numbers = #tpu.dot_dimension_numbers<[1], [0], [0], [1], [0, 0, 1, 1], [], []>} : vector<8x128xbf16>, vector<128x512xbf16>, vector<8x512xf32> -> vector<8x512xf32>
    %11 = arith.addf %8, %10 : vector<8x512xf32>
    %12 = vector.extract_strided_slice %11 {offsets = [0, 0], sizes = [8, 128], strides = [1, 1]} : vector<8x512xf32> to vector<8x128xf32>
    %13 = arith.negf %12 : vector<8x128xf32>
    %14 = math.exp %13 : vector<8x128xf32>
    %cst_9 = arith.constant 1.000000e+00 : f32
    %15 = vector.broadcast %cst_9 : f32 to vector<8x128xf32>
    %16 = arith.addf %15, %14 : vector<8x128xf32>
    %17 = arith.divf %15, %16 : vector<8x128xf32>
    %18 = vector.extract_strided_slice %11 {offsets = [0, 128], sizes = [8, 128], strides = [1, 1]} : vector<8x512xf32> to vector<8x128xf32>
    %19 = arith.negf %18 : vector<8x128xf32>
    %20 = math.exp %19 : vector<8x128xf32>
    %cst_10 = arith.constant 1.000000e+00 : f32
    %21 = vector.broadcast %cst_10 : f32 to vector<8x128xf32>
    %22 = arith.addf %21, %20 : vector<8x128xf32>
    %23 = arith.divf %21, %22 : vector<8x128xf32>
    %24 = vector.extract_strided_slice %11 {offsets = [0, 256], sizes = [8, 128], strides = [1, 1]} : vector<8x512xf32> to vector<8x128xf32>
    %25 = math.tanh %24 : vector<8x128xf32>
    %26 = vector.extract_strided_slice %11 {offsets = [0, 384], sizes = [8, 128], strides = [1, 1]} : vector<8x512xf32> to vector<8x128xf32>
    %27 = arith.negf %26 : vector<8x128xf32>
    %28 = math.exp %27 : vector<8x128xf32>
    %cst_11 = arith.constant 1.000000e+00 : f32
    %29 = vector.broadcast %cst_11 : f32 to vector<8x128xf32>
    %30 = arith.addf %29, %28 : vector<8x128xf32>
    %31 = arith.divf %29, %30 : vector<8x128xf32>
    %32 = arith.mulf %23, %5 : vector<8x128xf32>
    %33 = arith.mulf %17, %25 : vector<8x128xf32>
    %34 = arith.addf %32, %33 : vector<8x128xf32>
    %35 = math.tanh %34 : vector<8x128xf32>
    %36 = arith.mulf %31, %35 : vector<8x128xf32>
    %c1_i32 = arith.constant 1 : i32
    %37 = arith.index_cast %c1_i32 : i32 to index
    %c0_12 = arith.constant 0 : index
    %c0_13 = arith.constant 0 : index
    %38 = vector.load %arg1[%37, %c0_12, %c0_13] : memref<8x8x512xf32, #tpu.memory_space<vmem>>, vector<1x8x512xf32>
    %39 = vector.shape_cast %38 : vector<1x8x512xf32> to vector<8x512xf32>
    %40 = arith.truncf %36 : vector<8x128xf32> to vector<8x128xbf16>
    %cst_14 = arith.constant dense<0.000000e+00> : vector<8x512xf32>
    %41 = tpu.matmul %40, %3, %cst_14 {dimension_numbers = #tpu.dot_dimension_numbers<[1], [0], [0], [1], [0, 0, 1, 1], [], []>} : vector<8x128xbf16>, vector<128x512xbf16>, vector<8x512xf32> -> vector<8x512xf32>
    %42 = arith.addf %39, %41 : vector<8x512xf32>
    %43 = vector.extract_strided_slice %42 {offsets = [0, 0], sizes = [8, 128], strides = [1, 1]} : vector<8x512xf32> to vector<8x128xf32>
    %44 = arith.negf %43 : vector<8x128xf32>
    %45 = math.exp %44 : vector<8x128xf32>
    %cst_15 = arith.constant 1.000000e+00 : f32
    %46 = vector.broadcast %cst_15 : f32 to vector<8x128xf32>
    %47 = arith.addf %46, %45 : vector<8x128xf32>
    %48 = arith.divf %46, %47 : vector<8x128xf32>
    %49 = vector.extract_strided_slice %42 {offsets = [0, 128], sizes = [8, 128], strides = [1, 1]} : vector<8x512xf32> to vector<8x128xf32>
    %50 = arith.negf %49 : vector<8x128xf32>
    %51 = math.exp %50 : vector<8x128xf32>
    %cst_16 = arith.constant 1.000000e+00 : f32
    %52 = vector.broadcast %cst_16 : f32 to vector<8x128xf32>
    %53 = arith.addf %52, %51 : vector<8x128xf32>
    %54 = arith.divf %52, %53 : vector<8x128xf32>
    %55 = vector.extract_strided_slice %42 {offsets = [0, 256], sizes = [8, 128], strides = [1, 1]} : vector<8x512xf32> to vector<8x128xf32>
    %56 = math.tanh %55 : vector<8x128xf32>
    %57 = vector.extract_strided_slice %42 {offsets = [0, 384], sizes = [8, 128], strides = [1, 1]} : vector<8x512xf32> to vector<8x128xf32>
    %58 = arith.negf %57 : vector<8x128xf32>
    %59 = math.exp %58 : vector<8x128xf32>
    %cst_17 = arith.constant 1.000000e+00 : f32
    %60 = vector.broadcast %cst_17 : f32 to vector<8x128xf32>
    %61 = arith.addf %60, %59 : vector<8x128xf32>
    %62 = arith.divf %60, %61 : vector<8x128xf32>
    %63 = arith.mulf %54, %34 : vector<8x128xf32>
    %64 = arith.mulf %48, %56 : vector<8x128xf32>
    %65 = arith.addf %63, %64 : vector<8x128xf32>
    %66 = math.tanh %65 : vector<8x128xf32>
    %67 = arith.mulf %62, %66 : vector<8x128xf32>
    %c2_i32 = arith.constant 2 : i32
    %68 = arith.index_cast %c2_i32 : i32 to index
    %c0_18 = arith.constant 0 : index
    %c0_19 = arith.constant 0 : index
    %69 = vector.load %arg1[%68, %c0_18, %c0_19] : memref<8x8x512xf32, #tpu.memory_space<vmem>>, vector<1x8x512xf32>
    %70 = vector.shape_cast %69 : vector<1x8x512xf32> to vector<8x512xf32>
    %71 = arith.truncf %67 : vector<8x128xf32> to vector<8x128xbf16>
    %cst_20 = arith.constant dense<0.000000e+00> : vector<8x512xf32>
    %72 = tpu.matmul %71, %3, %cst_20 {dimension_numbers = #tpu.dot_dimension_numbers<[1], [0], [0], [1], [0, 0, 1, 1], [], []>} : vector<8x128xbf16>, vector<128x512xbf16>, vector<8x512xf32> -> vector<8x512xf32>
    %73 = arith.addf %70, %72 : vector<8x512xf32>
    %74 = vector.extract_strided_slice %73 {offsets = [0, 0], sizes = [8, 128], strides = [1, 1]} : vector<8x512xf32> to vector<8x128xf32>
    %75 = arith.negf %74 : vector<8x128xf32>
    %76 = math.exp %75 : vector<8x128xf32>
    %cst_21 = arith.constant 1.000000e+00 : f32
    %77 = vector.broadcast %cst_21 : f32 to vector<8x128xf32>
    %78 = arith.addf %77, %76 : vector<8x128xf32>
    %79 = arith.divf %77, %78 : vector<8x128xf32>
    %80 = vector.extract_strided_slice %73 {offsets = [0, 128], sizes = [8, 128], strides = [1, 1]} : vector<8x512xf32> to vector<8x128xf32>
    %81 = arith.negf %80 : vector<8x128xf32>
    %82 = math.exp %81 : vector<8x128xf32>
    %cst_22 = arith.constant 1.000000e+00 : f32
    %83 = vector.broadcast %cst_22 : f32 to vector<8x128xf32>
    %84 = arith.addf %83, %82 : vector<8x128xf32>
    %85 = arith.divf %83, %84 : vector<8x128xf32>
    %86 = vector.extract_strided_slice %73 {offsets = [0, 256], sizes = [8, 128], strides = [1, 1]} : vector<8x512xf32> to vector<8x128xf32>
    %87 = math.tanh %86 : vector<8x128xf32>
    %88 = vector.extract_strided_slice %73 {offsets = [0, 384], sizes = [8, 128], strides = [1, 1]} : vector<8x512xf32> to vector<8x128xf32>
    %89 = arith.negf %88 : vector<8x128xf32>
    %90 = math.exp %89 : vector<8x128xf32>
    %cst_23 = arith.constant 1.000000e+00 : f32
    %91 = vector.broadcast %cst_23 : f32 to vector<8x128xf32>
    %92 = arith.addf %91, %90 : vector<8x128xf32>
    %93 = arith.divf %91, %92 : vector<8x128xf32>
    %94 = arith.mulf %85, %65 : vector<8x128xf32>
    %95 = arith.mulf %79, %87 : vector<8x128xf32>
    %96 = arith.addf %94, %95 : vector<8x128xf32>
    %97 = math.tanh %96 : vector<8x128xf32>
    %98 = arith.mulf %93, %97 : vector<8x128xf32>
    %c3_i32 = arith.constant 3 : i32
    %99 = arith.index_cast %c3_i32 : i32 to index
    %c0_24 = arith.constant 0 : index
    %c0_25 = arith.constant 0 : index
    %100 = vector.load %arg1[%99, %c0_24, %c0_25] : memref<8x8x512xf32, #tpu.memory_space<vmem>>, vector<1x8x512xf32>
    %101 = vector.shape_cast %100 : vector<1x8x512xf32> to vector<8x512xf32>
    %102 = arith.truncf %98 : vector<8x128xf32> to vector<8x128xbf16>
    %cst_26 = arith.constant dense<0.000000e+00> : vector<8x512xf32>
    %103 = tpu.matmul %102, %3, %cst_26 {dimension_numbers = #tpu.dot_dimension_numbers<[1], [0], [0], [1], [0, 0, 1, 1], [], []>} : vector<8x128xbf16>, vector<128x512xbf16>, vector<8x512xf32> -> vector<8x512xf32>
    %104 = arith.addf %101, %103 : vector<8x512xf32>
    %105 = vector.extract_strided_slice %104 {offsets = [0, 0], sizes = [8, 128], strides = [1, 1]} : vector<8x512xf32> to vector<8x128xf32>
    %106 = arith.negf %105 : vector<8x128xf32>
    %107 = math.exp %106 : vector<8x128xf32>
    %cst_27 = arith.constant 1.000000e+00 : f32
    %108 = vector.broadcast %cst_27 : f32 to vector<8x128xf32>
    %109 = arith.addf %108, %107 : vector<8x128xf32>
    %110 = arith.divf %108, %109 : vector<8x128xf32>
    %111 = vector.extract_strided_slice %104 {offsets = [0, 128], sizes = [8, 128], strides = [1, 1]} : vector<8x512xf32> to vector<8x128xf32>
    %112 = arith.negf %111 : vector<8x128xf32>
    %113 = math.exp %112 : vector<8x128xf32>
    %cst_28 = arith.constant 1.000000e+00 : f32
    %114 = vector.broadcast %cst_28 : f32 to vector<8x128xf32>
    %115 = arith.addf %114, %113 : vector<8x128xf32>
    %116 = arith.divf %114, %115 : vector<8x128xf32>
    %117 = vector.extract_strided_slice %104 {offsets = [0, 256], sizes = [8, 128], strides = [1, 1]} : vector<8x512xf32> to vector<8x128xf32>
    %118 = math.tanh %117 : vector<8x128xf32>
    %119 = vector.extract_strided_slice %104 {offsets = [0, 384], sizes = [8, 128], strides = [1, 1]} : vector<8x512xf32> to vector<8x128xf32>
    %120 = arith.negf %119 : vector<8x128xf32>
    %121 = math.exp %120 : vector<8x128xf32>
    %cst_29 = arith.constant 1.000000e+00 : f32
    %122 = vector.broadcast %cst_29 : f32 to vector<8x128xf32>
    %123 = arith.addf %122, %121 : vector<8x128xf32>
    %124 = arith.divf %122, %123 : vector<8x128xf32>
    %125 = arith.mulf %116, %96 : vector<8x128xf32>
    %126 = arith.mulf %110, %118 : vector<8x128xf32>
    %127 = arith.addf %125, %126 : vector<8x128xf32>
    %128 = math.tanh %127 : vector<8x128xf32>
    %129 = arith.mulf %124, %128 : vector<8x128xf32>
    %c4_i32 = arith.constant 4 : i32
    %130 = arith.index_cast %c4_i32 : i32 to index
    %c0_30 = arith.constant 0 : index
    %c0_31 = arith.constant 0 : index
    %131 = vector.load %arg1[%130, %c0_30, %c0_31] : memref<8x8x512xf32, #tpu.memory_space<vmem>>, vector<1x8x512xf32>
    %132 = vector.shape_cast %131 : vector<1x8x512xf32> to vector<8x512xf32>
    %133 = arith.truncf %129 : vector<8x128xf32> to vector<8x128xbf16>
    %cst_32 = arith.constant dense<0.000000e+00> : vector<8x512xf32>
    %134 = tpu.matmul %133, %3, %cst_32 {dimension_numbers = #tpu.dot_dimension_numbers<[1], [0], [0], [1], [0, 0, 1, 1], [], []>} : vector<8x128xbf16>, vector<128x512xbf16>, vector<8x512xf32> -> vector<8x512xf32>
    %135 = arith.addf %132, %134 : vector<8x512xf32>
    %136 = vector.extract_strided_slice %135 {offsets = [0, 0], sizes = [8, 128], strides = [1, 1]} : vector<8x512xf32> to vector<8x128xf32>
    %137 = arith.negf %136 : vector<8x128xf32>
    %138 = math.exp %137 : vector<8x128xf32>
    %cst_33 = arith.constant 1.000000e+00 : f32
    %139 = vector.broadcast %cst_33 : f32 to vector<8x128xf32>
    %140 = arith.addf %139, %138 : vector<8x128xf32>
    %141 = arith.divf %139, %140 : vector<8x128xf32>
    %142 = vector.extract_strided_slice %135 {offsets = [0, 128], sizes = [8, 128], strides = [1, 1]} : vector<8x512xf32> to vector<8x128xf32>
    %143 = arith.negf %142 : vector<8x128xf32>
    %144 = math.exp %143 : vector<8x128xf32>
    %cst_34 = arith.constant 1.000000e+00 : f32
    %145 = vector.broadcast %cst_34 : f32 to vector<8x128xf32>
    %146 = arith.addf %145, %144 : vector<8x128xf32>
    %147 = arith.divf %145, %146 : vector<8x128xf32>
    %148 = vector.extract_strided_slice %135 {offsets = [0, 256], sizes = [8, 128], strides = [1, 1]} : vector<8x512xf32> to vector<8x128xf32>
    %149 = math.tanh %148 : vector<8x128xf32>
    %150 = vector.extract_strided_slice %135 {offsets = [0, 384], sizes = [8, 128], strides = [1, 1]} : vector<8x512xf32> to vector<8x128xf32>
    %151 = arith.negf %150 : vector<8x128xf32>
    %152 = math.exp %151 : vector<8x128xf32>
    %cst_35 = arith.constant 1.000000e+00 : f32
    %153 = vector.broadcast %cst_35 : f32 to vector<8x128xf32>
    %154 = arith.addf %153, %152 : vector<8x128xf32>
    %155 = arith.divf %153, %154 : vector<8x128xf32>
    %156 = arith.mulf %147, %127 : vector<8x128xf32>
    %157 = arith.mulf %141, %149 : vector<8x128xf32>
    %158 = arith.addf %156, %157 : vector<8x128xf32>
    %159 = math.tanh %158 : vector<8x128xf32>
    %160 = arith.mulf %155, %159 : vector<8x128xf32>
    %c5_i32 = arith.constant 5 : i32
    %161 = arith.index_cast %c5_i32 : i32 to index
    %c0_36 = arith.constant 0 : index
    %c0_37 = arith.constant 0 : index
    %162 = vector.load %arg1[%161, %c0_36, %c0_37] : memref<8x8x512xf32, #tpu.memory_space<vmem>>, vector<1x8x512xf32>
    %163 = vector.shape_cast %162 : vector<1x8x512xf32> to vector<8x512xf32>
    %164 = arith.truncf %160 : vector<8x128xf32> to vector<8x128xbf16>
    %cst_38 = arith.constant dense<0.000000e+00> : vector<8x512xf32>
    %165 = tpu.matmul %164, %3, %cst_38 {dimension_numbers = #tpu.dot_dimension_numbers<[1], [0], [0], [1], [0, 0, 1, 1], [], []>} : vector<8x128xbf16>, vector<128x512xbf16>, vector<8x512xf32> -> vector<8x512xf32>
    %166 = arith.addf %163, %165 : vector<8x512xf32>
    %167 = vector.extract_strided_slice %166 {offsets = [0, 0], sizes = [8, 128], strides = [1, 1]} : vector<8x512xf32> to vector<8x128xf32>
    %168 = arith.negf %167 : vector<8x128xf32>
    %169 = math.exp %168 : vector<8x128xf32>
    %cst_39 = arith.constant 1.000000e+00 : f32
    %170 = vector.broadcast %cst_39 : f32 to vector<8x128xf32>
    %171 = arith.addf %170, %169 : vector<8x128xf32>
    %172 = arith.divf %170, %171 : vector<8x128xf32>
    %173 = vector.extract_strided_slice %166 {offsets = [0, 128], sizes = [8, 128], strides = [1, 1]} : vector<8x512xf32> to vector<8x128xf32>
    %174 = arith.negf %173 : vector<8x128xf32>
    %175 = math.exp %174 : vector<8x128xf32>
    %cst_40 = arith.constant 1.000000e+00 : f32
    %176 = vector.broadcast %cst_40 : f32 to vector<8x128xf32>
    %177 = arith.addf %176, %175 : vector<8x128xf32>
    %178 = arith.divf %176, %177 : vector<8x128xf32>
    %179 = vector.extract_strided_slice %166 {offsets = [0, 256], sizes = [8, 128], strides = [1, 1]} : vector<8x512xf32> to vector<8x128xf32>
    %180 = math.tanh %179 : vector<8x128xf32>
    %181 = vector.extract_strided_slice %166 {offsets = [0, 384], sizes = [8, 128], strides = [1, 1]} : vector<8x512xf32> to vector<8x128xf32>
    %182 = arith.negf %181 : vector<8x128xf32>
    %183 = math.exp %182 : vector<8x128xf32>
    %cst_41 = arith.constant 1.000000e+00 : f32
    %184 = vector.broadcast %cst_41 : f32 to vector<8x128xf32>
    %185 = arith.addf %184, %183 : vector<8x128xf32>
    %186 = arith.divf %184, %185 : vector<8x128xf32>
    %187 = arith.mulf %178, %158 : vector<8x128xf32>
    %188 = arith.mulf %172, %180 : vector<8x128xf32>
    %189 = arith.addf %187, %188 : vector<8x128xf32>
    %190 = math.tanh %189 : vector<8x128xf32>
    %191 = arith.mulf %186, %190 : vector<8x128xf32>
    %c6_i32 = arith.constant 6 : i32
    %192 = arith.index_cast %c6_i32 : i32 to index
    %c0_42 = arith.constant 0 : index
    %c0_43 = arith.constant 0 : index
    %193 = vector.load %arg1[%192, %c0_42, %c0_43] : memref<8x8x512xf32, #tpu.memory_space<vmem>>, vector<1x8x512xf32>
    %194 = vector.shape_cast %193 : vector<1x8x512xf32> to vector<8x512xf32>
    %195 = arith.truncf %191 : vector<8x128xf32> to vector<8x128xbf16>
    %cst_44 = arith.constant dense<0.000000e+00> : vector<8x512xf32>
    %196 = tpu.matmul %195, %3, %cst_44 {dimension_numbers = #tpu.dot_dimension_numbers<[1], [0], [0], [1], [0, 0, 1, 1], [], []>} : vector<8x128xbf16>, vector<128x512xbf16>, vector<8x512xf32> -> vector<8x512xf32>
    %197 = arith.addf %194, %196 : vector<8x512xf32>
    %198 = vector.extract_strided_slice %197 {offsets = [0, 0], sizes = [8, 128], strides = [1, 1]} : vector<8x512xf32> to vector<8x128xf32>
    %199 = arith.negf %198 : vector<8x128xf32>
    %200 = math.exp %199 : vector<8x128xf32>
    %cst_45 = arith.constant 1.000000e+00 : f32
    %201 = vector.broadcast %cst_45 : f32 to vector<8x128xf32>
    %202 = arith.addf %201, %200 : vector<8x128xf32>
    %203 = arith.divf %201, %202 : vector<8x128xf32>
    %204 = vector.extract_strided_slice %197 {offsets = [0, 128], sizes = [8, 128], strides = [1, 1]} : vector<8x512xf32> to vector<8x128xf32>
    %205 = arith.negf %204 : vector<8x128xf32>
    %206 = math.exp %205 : vector<8x128xf32>
    %cst_46 = arith.constant 1.000000e+00 : f32
    %207 = vector.broadcast %cst_46 : f32 to vector<8x128xf32>
    %208 = arith.addf %207, %206 : vector<8x128xf32>
    %209 = arith.divf %207, %208 : vector<8x128xf32>
    %210 = vector.extract_strided_slice %197 {offsets = [0, 256], sizes = [8, 128], strides = [1, 1]} : vector<8x512xf32> to vector<8x128xf32>
    %211 = math.tanh %210 : vector<8x128xf32>
    %212 = vector.extract_strided_slice %197 {offsets = [0, 384], sizes = [8, 128], strides = [1, 1]} : vector<8x512xf32> to vector<8x128xf32>
    %213 = arith.negf %212 : vector<8x128xf32>
    %214 = math.exp %213 : vector<8x128xf32>
    %cst_47 = arith.constant 1.000000e+00 : f32
    %215 = vector.broadcast %cst_47 : f32 to vector<8x128xf32>
    %216 = arith.addf %215, %214 : vector<8x128xf32>
    %217 = arith.divf %215, %216 : vector<8x128xf32>
    %218 = arith.mulf %209, %189 : vector<8x128xf32>
    %219 = arith.mulf %203, %211 : vector<8x128xf32>
    %220 = arith.addf %218, %219 : vector<8x128xf32>
    %221 = math.tanh %220 : vector<8x128xf32>
    %222 = arith.mulf %217, %221 : vector<8x128xf32>
    %c7_i32 = arith.constant 7 : i32
    %223 = arith.index_cast %c7_i32 : i32 to index
    %c0_48 = arith.constant 0 : index
    %c0_49 = arith.constant 0 : index
    %224 = vector.load %arg1[%223, %c0_48, %c0_49] : memref<8x8x512xf32, #tpu.memory_space<vmem>>, vector<1x8x512xf32>
    %225 = vector.shape_cast %224 : vector<1x8x512xf32> to vector<8x512xf32>
    %226 = arith.truncf %222 : vector<8x128xf32> to vector<8x128xbf16>
    %cst_50 = arith.constant dense<0.000000e+00> : vector<8x512xf32>
    %227 = tpu.matmul %226, %3, %cst_50 {dimension_numbers = #tpu.dot_dimension_numbers<[1], [0], [0], [1], [0, 0, 1, 1], [], []>} : vector<8x128xbf16>, vector<128x512xbf16>, vector<8x512xf32> -> vector<8x512xf32>
    %228 = arith.addf %225, %227 : vector<8x512xf32>
    %229 = vector.extract_strided_slice %228 {offsets = [0, 0], sizes = [8, 128], strides = [1, 1]} : vector<8x512xf32> to vector<8x128xf32>
    %230 = arith.negf %229 : vector<8x128xf32>
    %231 = math.exp %230 : vector<8x128xf32>
    %cst_51 = arith.constant 1.000000e+00 : f32
    %232 = vector.broadcast %cst_51 : f32 to vector<8x128xf32>
    %233 = arith.addf %232, %231 : vector<8x128xf32>
    %234 = arith.divf %232, %233 : vector<8x128xf32>
    %235 = vector.extract_strided_slice %228 {offsets = [0, 128], sizes = [8, 128], strides = [1, 1]} : vector<8x512xf32> to vector<8x128xf32>
    %236 = arith.negf %235 : vector<8x128xf32>
    %237 = math.exp %236 : vector<8x128xf32>
    %cst_52 = arith.constant 1.000000e+00 : f32
    %238 = vector.broadcast %cst_52 : f32 to vector<8x128xf32>
    %239 = arith.addf %238, %237 : vector<8x128xf32>
    %240 = arith.divf %238, %239 : vector<8x128xf32>
    %241 = vector.extract_strided_slice %228 {offsets = [0, 256], sizes = [8, 128], strides = [1, 1]} : vector<8x512xf32> to vector<8x128xf32>
    %242 = math.tanh %241 : vector<8x128xf32>
    %243 = vector.extract_strided_slice %228 {offsets = [0, 384], sizes = [8, 128], strides = [1, 1]} : vector<8x512xf32> to vector<8x128xf32>
    %244 = arith.negf %243 : vector<8x128xf32>
    %245 = math.exp %244 : vector<8x128xf32>
    %cst_53 = arith.constant 1.000000e+00 : f32
    %246 = vector.broadcast %cst_53 : f32 to vector<8x128xf32>
    %247 = arith.addf %246, %245 : vector<8x128xf32>
    %248 = arith.divf %246, %247 : vector<8x128xf32>
    %249 = arith.mulf %240, %220 : vector<8x128xf32>
    %250 = arith.mulf %234, %242 : vector<8x128xf32>
    %251 = arith.addf %249, %250 : vector<8x128xf32>
    %252 = math.tanh %251 : vector<8x128xf32>
    %253 = arith.mulf %248, %252 : vector<8x128xf32>
    %c8_i32 = arith.constant 8 : i32
    %c0_54 = arith.constant 0 : index
    %c0_55 = arith.constant 0 : index
    %254 = vector.load %arg6[%c0_54, %c0_55] : memref<8x128xf32, #tpu.memory_space<vmem>>, vector<8x128xf32>
    tpu.vector_store %arg6[%c0_54, %c0_55], %253 {strides = array<i32>} : memref<8x128xf32, #tpu.memory_space<vmem>>, vector<8x128xf32>,
    %c0_56 = arith.constant 0 : index
    %c0_57 = arith.constant 0 : index
    %255 = vector.load %arg7[%c0_56, %c0_57] : memref<8x128xf32, #tpu.memory_space<vmem>>, vector<8x128xf32>
    tpu.vector_store %arg7[%c0_56, %c0_57], %251 {strides = array<i32>} : memref<8x128xf32, #tpu.memory_space<vmem>>, vector<8x128xf32>,
    %c0_i32_58 = arith.constant 0 : i32
    %256 = arith.cmpi eq, %arg0, %c0_i32_58 : i32
    %257 = arith.extui %256 : i1 to i32
    %c0_i32_59 = arith.constant 0 : i32
    %258 = arith.cmpi ne, %257, %c0_i32_59 : i32
    scf.if %258 {
      %c0_60 = arith.constant 0 : index
      %c0_61 = arith.constant 0 : index
      %259 = vector.load %arg3[%c0_60, %c0_61] : memref<1x128xf32, #tpu.memory_space<vmem>>, vector<1x128xf32>
      %260 = vector.broadcast %259 : vector<1x128xf32> to vector<8x128xf32>
      %261 = arith.mulf %253, %260 : vector<8x128xf32>
      %cst_62 = arith.constant dense<0.000000e+00> : vector<8xf32>
      %262 = vector.multi_reduction <add>, %261, %cst_62 [1] : vector<8x128xf32> to vector<8xf32>
      %263 = vector.shape_cast %262 : vector<8xf32> to vector<8x1xf32>
      %c0_63 = arith.constant 0 : index
      %c0_64 = arith.constant 0 : index
      %264 = vector.load %arg4[%c0_63, %c0_64] : memref<1x128xf32, #tpu.memory_space<vmem>>, vector<1x128xf32>
      %265 = vector.broadcast %263 : vector<8x1xf32> to vector<8x128xf32>
      %266 = vector.broadcast %264 : vector<1x128xf32> to vector<8x128xf32>
      %267 = arith.addf %265, %266 : vector<8x128xf32>
      %268 = arith.negf %267 : vector<8x128xf32>
      %269 = math.exp %268 : vector<8x128xf32>
      %cst_65 = arith.constant 1.000000e+00 : f32
      %270 = vector.broadcast %cst_65 : f32 to vector<8x128xf32>
      %271 = arith.addf %270, %269 : vector<8x128xf32>
      %272 = arith.divf %270, %271 : vector<8x128xf32>
      %c0_66 = arith.constant 0 : index
      %c0_67 = arith.constant 0 : index
      %273 = vector.load %arg5[%c0_66, %c0_67] : memref<8x128xf32, #tpu.memory_space<vmem>>, vector<8x128xf32>
      tpu.vector_store %arg5[%c0_66, %c0_67], %272 {strides = array<i32>} : memref<8x128xf32, #tpu.memory_space<vmem>>, vector<8x128xf32>,
    } else {
    }
    return
  }
  func.func @transform_0(%arg0: i32) -> (i32, i32, i32) {
    %c0_i32 = arith.constant 0 : i32
    %c0_i32_0 = arith.constant 0 : i32
    %c0_i32_1 = arith.constant 0 : i32
    return %arg0, %c0_i32, %c0_i32_0 : i32, i32, i32
  }
  func.func @transform_1(%arg0: i32) -> (i32, i32) {
    %c0_i32 = arith.constant 0 : i32
    %c0_i32_0 = arith.constant 0 : i32
    %c0_i32_1 = arith.constant 0 : i32
    return %c0_i32, %c0_i32_0 : i32, i32
  }
  func.func @transform_2(%arg0: i32) -> (i32, i32) {
    %c0_i32 = arith.constant 0 : i32
    %c0_i32_0 = arith.constant 0 : i32
    %c0_i32_1 = arith.constant 0 : i32
    return %c0_i32, %c0_i32_0 : i32, i32
  }
  func.func @transform_3(%arg0: i32) -> (i32, i32) {
    %c0_i32 = arith.constant 0 : i32
    %c0_i32_0 = arith.constant 0 : i32
    %c0_i32_1 = arith.constant 0 : i32
    return %c0_i32, %c0_i32_0 : i32, i32
  }
  func.func @transform_4(%arg0: i32) -> (i32, i32) {
    %c0_i32 = arith.constant 0 : i32
    %c0_i32_0 = arith.constant 0 : i32
    %c0_i32_1 = arith.constant 0 : i32
    return %c0_i32, %c0_i32_0 : i32, i32
  }
}

</mosaic_0001>

<llo_original>
// kernel: tpu_custom_call.1
$region0: #{tpu_custom_call.1}
  #allocation0 [shape = 'u32[]', space=smem, size = 0x4, offset = 0x4, fixed_abs, tag = 'smem constant byte address 0x4 - core index']
  #allocation1 [shape = 'u32[144,128]{1,0:T(1,128)}', space=vmem, size = 0x12000, scoped, tag = 'internal scratch']
  #allocation2 [shape = 'f32[8,128]{1,0:T(8,128)}', space=vmem, size = 0x1000, scoped, tag = 'scratch operand']
  #allocation3 [shape = 'f32[8,128]{1,0:T(8,128)}', space=vmem, size = 0x1000, scoped, tag = 'scratch operand']
  %s0 = inlined_call_operand.hbm [shape: f32[8,8,512], index: 0, kind: input, shape index: {}]
  %s1 = inlined_call_operand.hbm [shape: bf16[128,512], index: 1, kind: input, shape index: {}]
  %s2 = inlined_call_operand.vmem [shape: f32[1,128], index: 2, kind: input, shape index: {}]
  %s3 = inlined_call_operand.vmem [shape: f32[1,128], index: 3, kind: input, shape index: {}]
  %s4 = inlined_call_operand.hbm [shape: f32[8,128], index: 4, kind: output, shape index: {}]
  %s5 = sld [smem:[#allocation0]]
  $region42: #{tpu_custom_call.1} parent=0
    _
  %s7 = ssub.s32 1, %s5
  %s8 = scalar_select 0, %s7, %s5
  $region1: #{tpu_custom_call.1} parent=0
    #allocation4 [shape = 'u8[131072]{0}', space=vmem, size = 0x20000, scoped, tag = 'input window, operand 0, single buffered']
    #allocation5 [shape = 's32[1]{0}', space=sflag, size = 0x4, scoped, tag = 'scoped memory for tpu_custom_call.1']
    #allocation6 [shape = 's32[1]{0}', space=sflag, size = 0x4, scoped, tag = 'scoped memory for tpu_custom_call.1']
    #allocation7 [shape = 'u8[131072]{0}', space=vmem, size = 0x20000, scoped, tag = 'input window, operand 1, single buffered']
    #allocation8 [shape = 's32[1]{0}', space=sflag, size = 0x4, scoped, tag = 'scoped memory for tpu_custom_call.1']
    #allocation9 [shape = 'u8[4096]{0}', space=vmem, size = 0x1000, scoped, tag = 'output window, operand 0, single buffered']
    %9 = vsyncpa [#allocation5], 0
    %10 = vsyncpa [#allocation8], 0
    %11 = vsyncpa [#allocation6], 0
    // Predicated region
    $region2: #{tpu_custom_call.1} parent=1 // pred_check
      _
    $region3: #{tpu_custom_call.1} parent=1 // pred_check_branch
      %13 = sbr.rel (0) target = $region5
    $region4: #{tpu_custom_call.1} parent=1 // pred_region
      %s15 = ssub.s32 4096, 4096
      %16 = vsyncadd [#allocation5], %s15
      %s17 = sshll.u32 [#allocation4], 4
      %s18 = int_to_ptr.vmem [resolvable:$true] %s17
      %23 = dma.hbm_to_vmem [thread:$0]  %s0, 4096, %s18, [#allocation5], 512, 512, 32
    $region5: #{tpu_custom_call.1} parent=1 // pred_fallthru
      _
    // Predicated region
    $region6: #{tpu_custom_call.1} parent=1 // pred_check
      _
    $region7: #{tpu_custom_call.1} parent=1 // pred_check_branch
      %25 = sbr.rel (0) target = $region9
    $region8: #{tpu_custom_call.1} parent=1 // pred_region
      %s27 = ssub.s32 4096, 4096
      %28 = vsyncadd [#allocation8], %s27
      %s29 = sshll.u32 [#allocation7], 4
      %s30 = int_to_ptr.vmem [resolvable:$true] %s29
      %35 = dma.hbm_to_vmem [thread:$0]  %s1, 4096, %s30, [#allocation8], 256, 256, 16
    $region9: #{tpu_custom_call.1} parent=1 // pred_fallthru
      _
    // Predicated region
    $region10: #{tpu_custom_call.1} parent=1 // pred_check
      _
    $region11: #{tpu_custom_call.1} parent=1 // pred_check_branch
      %37 = sbr.rel (0) target = $region13
    $region12: #{tpu_custom_call.1} parent=1 // pred_region
      _
    $region13: #{tpu_custom_call.1} parent=1 // pred_fallthru
      _
    // Predicated region
    $region14: #{tpu_custom_call.1} parent=1 // pred_check
      _
    $region15: #{tpu_custom_call.1} parent=1 // pred_check_branch
      %39 = sbr.rel (0) target = $region17
    $region16: #{tpu_custom_call.1} parent=1 // pred_region
      _
    $region17: #{tpu_custom_call.1} parent=1 // pred_fallthru
      _
    // Predicated region
    $region18: #{tpu_custom_call.1} parent=1 // pred_check
      _
    $region19: #{tpu_custom_call.1} parent=1 // pred_check_branch
      %41 = sbr.rel (0) target = $region21
    $region20: #{tpu_custom_call.1} parent=1 // pred_region
      %42 = dma.done [#allocation5], 4096
    $region21: #{tpu_custom_call.1} parent=1 // pred_fallthru
      _
    // Predicated region
    $region22: #{tpu_custom_call.1} parent=1 // pred_check
      _
    $region23: #{tpu_custom_call.1} parent=1 // pred_check_branch
      %44 = sbr.rel (0) target = $region25
    $region24: #{tpu_custom_call.1} parent=1 // pred_region
      %45 = dma.done [#allocation8], 4096
    $region25: #{tpu_custom_call.1} parent=1 // pred_fallthru
      _
    %p47 = scmp.eq.s32.totalorder 0, 0
    // Predicated region
    $region26: #{tpu_custom_call.1} parent=1 // pred_check
      %p48 = pneg %p47
    $region27: #{tpu_custom_call.1} parent=1 // pred_check_branch
      %50 = sbr.rel (%p48) target = $region29
    $region28: #{tpu_custom_call.1} parent=1 // pred_region
      %51 = vst [vmem:[#allocation2] sm:$0xff] 0.0
      %52 = vst [vmem:[#allocation3] sm:$0xff] 0.0
    $region29: #{tpu_custom_call.1} parent=1 // pred_fallthru
      _
    %v53 = vld [vmem:[#allocation7] sm:$0xff]
    %v54 = vld [vmem:[#allocation7 + $0x8] sm:$0xff]
    %v55 = vld [vmem:[#allocation7 + $0x10] sm:$0xff]
    %v56 = vld [vmem:[#allocation7 + $0x18] sm:$0xff]
    %v57 = vld [vmem:[#allocation7 + $0x20] sm:$0xff]
    %v58 = vld [vmem:[#allocation7 + $0x28] sm:$0xff]
    %v59 = vld [vmem:[#allocation7 + $0x30] sm:$0xff]
    %v60 = vld [vmem:[#allocation7 + $0x38] sm:$0xff]
    %v61 = vld [vmem:[#allocation7 + $0x40] sm:$0xff]
    %v62 = vld [vmem:[#allocation7 + $0x48] sm:$0xff]
    %v63 = vld [vmem:[#allocation7 + $0x50] sm:$0xff]
    %v64 = vld [vmem:[#allocation7 + $0x58] sm:$0xff]
    %v65 = vld [vmem:[#allocation7 + $0x60] sm:$0xff]
    %v66 = vld [vmem:[#allocation7 + $0x68] sm:$0xff]
    %v67 = vld [vmem:[#allocation7 + $0x70] sm:$0xff]
    %v68 = vld [vmem:[#allocation7 + $0x78] sm:$0xff]
    %v69 = vld [vmem:[#allocation7 + $0x80] sm:$0xff]
    %v70 = vld [vmem:[#allocation7 + $0x88] sm:$0xff]
    %v71 = vld [vmem:[#allocation7 + $0x90] sm:$0xff]
    %v72 = vld [vmem:[#allocation7 + $0x98] sm:$0xff]
    %v73 = vld [vmem:[#allocation7 + $0xa0] sm:$0xff]
    %v74 = vld [vmem:[#allocation7 + $0xa8] sm:$0xff]
    %v75 = vld [vmem:[#allocation7 + $0xb0] sm:$0xff]
    %v76 = vld [vmem:[#allocation7 + $0xb8] sm:$0xff]
    %v77 = vld [vmem:[#allocation7 + $0xc0] sm:$0xff]
    %v78 = vld [vmem:[#allocation7 + $0xc8] sm:$0xff]
    %v79 = vld [vmem:[#allocation7 + $0xd0] sm:$0xff]
    %v80 = vld [vmem:[#allocation7 + $0xd8] sm:$0xff]
    %v81 = vld [vmem:[#allocation7 + $0xe0] sm:$0xff]
    %v82 = vld [vmem:[#allocation7 + $0xe8] sm:$0xff]
    %v83 = vld [vmem:[#allocation7 + $0xf0] sm:$0xff]
    %v84 = vld [vmem:[#allocation7 + $0xf8] sm:$0xff]
    %v85 = vld [vmem:[#allocation2] sm:$0xff]
    %v86 = vld [vmem:[#allocation3] sm:$0xff]
    %v87 = vld [vmem:[#allocation4] sm:$0xff]
    %v88 = vld [vmem:[#allocation4 + $0x8] sm:$0xff]
    %v89 = vld [vmem:[#allocation4 + $0x10] sm:$0xff]
    %v90 = vld [vmem:[#allocation4 + $0x18] sm:$0xff]
    %v91 = vpack.c.bf16 %v85, %v85
    %v124 = vunpack.c.l.b16 %v53
    %v125 = vunpack.c.h.b16 %v53
    %v126 = vunpack.c.l.b16 %v54
    %v127 = vunpack.c.h.b16 %v54
    %v128 = vunpack.c.l.b16 %v55
    %v129 = vunpack.c.h.b16 %v55
    %v130 = vunpack.c.l.b16 %v56
    %v131 = vunpack.c.h.b16 %v56
    %v132 = vunpack.c.l.b16 %v57
    %v133 = vunpack.c.h.b16 %v57
    %v134 = vunpack.c.l.b16 %v58
    %v135 = vunpack.c.h.b16 %v58
    %v136 = vunpack.c.l.b16 %v59
    %v137 = vunpack.c.h.b16 %v59
    %v138 = vunpack.c.l.b16 %v60
    %v139 = vunpack.c.h.b16 %v60
    %v140 = vunpack.c.l.b16 %v61
    %v141 = vunpack.c.h.b16 %v61
    %v142 = vunpack.c.l.b16 %v62
    %v143 = vunpack.c.h.b16 %v62
    %v144 = vunpack.c.l.b16 %v63
    %v145 = vunpack.c.h.b16 %v63
    %v146 = vunpack.c.l.b16 %v64
    %v147 = vunpack.c.h.b16 %v64
    %v148 = vunpack.c.l.b16 %v65
    %v149 = vunpack.c.h.b16 %v65
    %v150 = vunpack.c.l.b16 %v66
    %v151 = vunpack.c.h.b16 %v66
    %v152 = vunpack.c.l.b16 %v67
    %v153 = vunpack.c.h.b16 %v67
    %v154 = vunpack.c.l.b16 %v68
    %v155 = vunpack.c.h.b16 %v68
    %v156 = vunpack.c.l.b16 %v69
    %v157 = vunpack.c.h.b16 %v69
    %v158 = vunpack.c.l.b16 %v70
    %v159 = vunpack.c.h.b16 %v70
    %v160 = vunpack.c.l.b16 %v71
    %v161 = vunpack.c.h.b16 %v71
    %v162 = vunpack.c.l.b16 %v72
    %v163 = vunpack.c.h.b16 %v72
    %v164 = vunpack.c.l.b16 %v73
    %v165 = vunpack.c.h.b16 %v73
    %v166 = vunpack.c.l.b16 %v74
    %v167 = vunpack.c.h.b16 %v74
    %v168 = vunpack.c.l.b16 %v75
    %v169 = vunpack.c.h.b16 %v75
    %v170 = vunpack.c.l.b16 %v76
    %v171 = vunpack.c.h.b16 %v76
    %v172 = vunpack.c.l.b16 %v77
    %v173 = vunpack.c.h.b16 %v77
    %v174 = vunpack.c.l.b16 %v78
    %v175 = vunpack.c.h.b16 %v78
    %v176 = vunpack.c.l.b16 %v79
    %v177 = vunpack.c.h.b16 %v79
    %v178 = vunpack.c.l.b16 %v80
    %v179 = vunpack.c.h.b16 %v80
    %v180 = vunpack.c.l.b16 %v81
    %v181 = vunpack.c.h.b16 %v81
    %v182 = vunpack.c.l.b16 %v82
    %v183 = vunpack.c.h.b16 %v82
    %v184 = vunpack.c.l.b16 %v83
    %v185 = vunpack.c.h.b16 %v83
    %v186 = vunpack.c.l.b16 %v84
    %v187 = vunpack.c.h.b16 %v84
    %v188 = vpack.c.b16 %v128, %v124
    %v189 = vpack.c.b16 %v129, %v125
    %v190 = vpack.c.b16 %v130, %v126
    %v191 = vpack.c.b16 %v131, %v127
    %v192 = vpack.c.b16 %v136, %v132
    %v193 = vpack.c.b16 %v137, %v133
    %v194 = vpack.c.b16 %v138, %v134
    %v195 = vpack.c.b16 %v139, %v135
    %v196 = vpack.c.b16 %v144, %v140
    %v197 = vpack.c.b16 %v145, %v141
    %v198 = vpack.c.b16 %v146, %v142
    %v199 = vpack.c.b16 %v147, %v143
    %v200 = vpack.c.b16 %v152, %v148
    %v201 = vpack.c.b16 %v153, %v149
    %v202 = vpack.c.b16 %v154, %v150
    %v203 = vpack.c.b16 %v155, %v151
    %v204 = vpack.c.b16 %v160, %v156
    %v205 = vpack.c.b16 %v161, %v157
    %v206 = vpack.c.b16 %v162, %v158
    %v207 = vpack.c.b16 %v163, %v159
    %v208 = vpack.c.b16 %v168, %v164
    %v209 = vpack.c.b16 %v169, %v165
    %v210 = vpack.c.b16 %v170, %v166
    %v211 = vpack.c.b16 %v171, %v167
    %v212 = vpack.c.b16 %v176, %v172
    %v213 = vpack.c.b16 %v177, %v173
    %v214 = vpack.c.b16 %v178, %v174
    %v215 = vpack.c.b16 %v179, %v175
    %v216 = vpack.c.b16 %v184, %v180
    %v217 = vpack.c.b16 %v185, %v181
    %v218 = vpack.c.b16 %v186, %v182
    %v219 = vpack.c.b16 %v187, %v183
    %252 = vmatprep.subr.bf16.mxu0 %v189
    %253 = vmatpush1.bf16.msra.mxu0 %v188
    %254 = vmatprep.subr.bf16.mxu0 %v193
    %255 = vmatpush1.bf16.msra.mxu0 %v192
    %256 = vmatprep.subr.bf16.mxu0 %v197
    %257 = vmatpush1.bf16.msra.mxu0 %v196
    %258 = vmatprep.subr.bf16.mxu0 %v201
    %259 = vmatpush1.bf16.msra.mxu0 %v200
    %260 = vmatprep.subr.bf16.mxu0 %v205
    %261 = vmatpush1.bf16.msra.mxu0 %v204
    %262 = vmatprep.subr.bf16.mxu0 %v209
    %263 = vmatpush1.bf16.msra.mxu0 %v208
    %264 = vmatprep.subr.bf16.mxu0 %v213
    %265 = vmatpush1.bf16.msra.mxu0 %v212
    %266 = vmatprep.subr.bf16.mxu0 %v217
    %267 = vmatpush1.bf16.msra.mxu0 %v216
    %268 = vmatprep.subr.bf16.mxu0 0
    %269 = vmatpush1.bf16.msra.mxu0 0
    %270 = vmatprep.subr.bf16.mxu0 0
    %271 = vmatpush1.bf16.msra.mxu0 0
    %272 = vmatprep.subr.bf16.mxu0 0
    %273 = vmatpush1.bf16.msra.mxu0 0
    %274 = vmatprep.subr.bf16.mxu0 0
    %275 = vmatpush1.bf16.msra.mxu0 0
    %276 = vmatprep.subr.bf16.mxu0 0
    %277 = vmatpush1.bf16.msra.mxu0 0
    %278 = vmatprep.subr.bf16.mxu0 0
    %279 = vmatpush1.bf16.msra.mxu0 0
    %280 = vmatprep.subr.bf16.mxu0 0
    %281 = vmatpush1.bf16.msra.mxu0 0
    %282 = vmatprep.subr.bf16.mxu0 0
    %283 = vmatpush1.bf16.msra.mxu0 0
    %284 = vmatprep.mubr.bf16.mxu0 0
    %285 = vmatmul.mubr.bf16.gmra.mrb[0].mxu0 %v91
    %v286 = vpop.f32.mrb[0].mxu0
    %v287 = vadd.f32 0.0, %v286
    %v288 = vpop.f32.mrb[0].mxu0
    %v289 = vadd.f32 0.0, %v288
    %v290 = vpop.f32.mrb[0].mxu0
    %v291 = vpop.f32.mrb[0].mxu0
    %292 = vdwg.mxu0
    %293 = vmatprep.subr.bf16.mxu0 %v191
    %294 = vmatpush1.bf16.msra.mxu0 %v190
    %295 = vmatprep.subr.bf16.mxu0 %v195
    %296 = vmatpush1.bf16.msra.mxu0 %v194
    %297 = vmatprep.subr.bf16.mxu0 %v199
    %298 = vmatpush1.bf16.msra.mxu0 %v198
    %299 = vmatprep.subr.bf16.mxu0 %v203
    %300 = vmatpush1.bf16.msra.mxu0 %v202
    %301 = vmatprep.subr.bf16.mxu0 %v207
    %302 = vmatpush1.bf16.msra.mxu0 %v206
    %303 = vmatprep.subr.bf16.mxu0 %v211
    %304 = vmatpush1.bf16.msra.mxu0 %v210
    %305 = vmatprep.subr.bf16.mxu0 %v215
    %306 = vmatpush1.bf16.msra.mxu0 %v214
    %307 = vmatprep.subr.bf16.mxu0 %v219
    %308 = vmatpush1.bf16.msra.mxu0 %v218
    %309 = vmatprep.subr.bf16.mxu0 0
    %310 = vmatpush1.bf16.msra.mxu0 0
    %311 = vmatprep.subr.bf16.mxu0 0
    %312 = vmatpush1.bf16.msra.mxu0 0
    %313 = vmatprep.subr.bf16.mxu0 0
    %314 = vmatpush1.bf16.msra.mxu0 0
    %315 = vmatprep.subr.bf16.mxu0 0
    %316 = vmatpush1.bf16.msra.mxu0 0
    %317 = vmatprep.subr.bf16.mxu0 0
    %318 = vmatpush1.bf16.msra.mxu0 0
    %319 = vmatprep.subr.bf16.mxu0 0
    %320 = vmatpush1.bf16.msra.mxu0 0
    %321 = vmatprep.subr.bf16.mxu0 0
    %322 = vmatpush1.bf16.msra.mxu0 0
    %323 = vmatprep.subr.bf16.mxu0 0
    %324 = vmatpush1.bf16.msra.mxu0 0
    %325 = vmatprep.mubr.bf16.mxu0 0
    %326 = vmatmul.mubr.bf16.gmra.mrb[0].mxu0 %v91
    %v327 = vpop.f32.mrb[0].mxu0
    %v328 = vadd.f32 0.0, %v327
    %v329 = vpop.f32.mrb[0].mxu0
    %v330 = vadd.f32 0.0, %v329
    %v331 = vpop.f32.mrb[0].mxu0
    %v332 = vpop.f32.mrb[0].mxu0
    %333 = vdwg.mxu0
    %v334 = vadd.f32 %v87, %v287
    %v335 = vadd.f32 %v88, %v289
    %v336 = vadd.f32 %v89, %v328
    %v337 = vadd.f32 %v90, %v330
    %v338 = vxor.u32 %v334, 2147483648
    %v339 = vmul.f32 %v338, 1.442695
    %v340 = vpow.pop %v339
    %v341 = vadd.f32 %v340, 1.0
    %v342 = vrcp.pop %v341
    %v343 = vmul.f32 1.0, %v342
    %v344 = vxor.u32 %v335, 2147483648
    %v345 = vmul.f32 %v344, 1.442695
    %v346 = vpow.pop %v345
    %v347 = vadd.f32 %v346, 1.0
    %v348 = vrcp.pop %v347
    %v349 = vmul.f32 1.0, %v348
    %v350 = vtanh.pop %v336
    %v351 = vxor.u32 %v337, 2147483648
    %v352 = vmul.f32 %v351, 1.442695
    %v353 = vpow.pop %v352
    %v354 = vadd.f32 %v353, 1.0
    %v355 = vrcp.pop %v354
    %v356 = vmul.f32 1.0, %v355
    %v357 = vmul.f32 %v349, %v86
    %v358 = vmul.f32 %v343, %v350
    %v359 = vadd.f32 %v357, %v358
    %v360 = vtanh.pop %v359
    %v361 = vmul.f32 %v356, %v360
    %s362 = scalar_lea.vmem [#allocation4], 32
    %v363 = vld [vmem:[%s362] sm:$0xff]
    %v364 = vld [vmem:[%s362 + $0x8] sm:$0xff]
    %v365 = vld [vmem:[%s362 + $0x10] sm:$0xff]
    %v366 = vld [vmem:[%s362 + $0x18] sm:$0xff]
    %v367 = vpack.c.bf16 %v361, %v361
    %368 = vmatprep.subr.bf16.mxu0 %v189
    %369 = vmatpush1.bf16.msra.mxu0 %v188
    %370 = vmatprep.subr.bf16.mxu0 %v193
    %371 = vmatpush1.bf16.msra.mxu0 %v192
    %372 = vmatprep.subr.bf16.mxu0 %v197
    %373 = vmatpush1.bf16.msra.mxu0 %v196
    %374 = vmatprep.subr.bf16.mxu0 %v201
    %375 = vmatpush1.bf16.msra.mxu0 %v200
    %376 = vmatprep.subr.bf16.mxu0 %v205
    %377 = vmatpush1.bf16.msra.mxu0 %v204
    %378 = vmatprep.subr.bf16.mxu0 %v209
    %379 = vmatpush1.bf16.msra.mxu0 %v208
    %380 = vmatprep.subr.bf16.mxu0 %v213
    %381 = vmatpush1.bf16.msra.mxu0 %v212
    %382 = vmatprep.subr.bf16.mxu0 %v217
    %383 = vmatpush1.bf16.msra.mxu0 %v216
    %384 = vmatprep.subr.bf16.mxu0 0
    %385 = vmatpush1.bf16.msra.mxu0 0
    %386 = vmatprep.subr.bf16.mxu0 0
    %387 = vmatpush1.bf16.msra.mxu0 0
    %388 = vmatprep.subr.bf16.mxu0 0
    %389 = vmatpush1.bf16.msra.mxu0 0
    %390 = vmatprep.subr.bf16.mxu0 0
    %391 = vmatpush1.bf16.msra.mxu0 0
    %392 = vmatprep.subr.bf16.mxu0 0
    %393 = vmatpush1.bf16.msra.mxu0 0
    %394 = vmatprep.subr.bf16.mxu0 0
    %395 = vmatpush1.bf16.msra.mxu0 0
    %396 = vmatprep.subr.bf16.mxu0 0
    %397 = vmatpush1.bf16.msra.mxu0 0
    %398 = vmatprep.subr.bf16.mxu0 0
    %399 = vmatpush1.bf16.msra.mxu0 0
    %400 = vmatprep.mubr.bf16.mxu0 0
    %401 = vmatmul.mubr.bf16.gmra.mrb[0].mxu0 %v367
    %v402 = vpop.f32.mrb[0].mxu0
    %v403 = vadd.f32 0.0, %v402
    %v404 = vpop.f32.mrb[0].mxu0
    %v405 = vadd.f32 0.0, %v404
    %v406 = vpop.f32.mrb[0].mxu0
    %v407 = vpop.f32.mrb[0].mxu0
    %408 = vdwg.mxu0
    %409 = vmatprep.subr.bf16.mxu0 %v191
    %410 = vmatpush1.bf16.msra.mxu0 %v190
    %411 = vmatprep.subr.bf16.mxu0 %v195
    %412 = vmatpush1.bf16.msra.mxu0 %v194
    %413 = vmatprep.subr.bf16.mxu0 %v199
    %414 = vmatpush1.bf16.msra.mxu0 %v198
    %415 = vmatprep.subr.bf16.mxu0 %v203
    %416 = vmatpush1.bf16.msra.mxu0 %v202
    %417 = vmatprep.subr.bf16.mxu0 %v207
    %418 = vmatpush1.bf16.msra.mxu0 %v206
    %419 = vmatprep.subr.bf16.mxu0 %v211
    %420 = vmatpush1.bf16.msra.mxu0 %v210
    %421 = vmatprep.subr.bf16.mxu0 %v215
    %422 = vmatpush1.bf16.msra.mxu0 %v214
    %423 = vmatprep.subr.bf16.mxu0 %v219
    %424 = vmatpush1.bf16.msra.mxu0 %v218
    %425 = vmatprep.subr.bf16.mxu0 0
    %426 = vmatpush1.bf16.msra.mxu0 0
    %427 = vmatprep.subr.bf16.mxu0 0
    %428 = vmatpush1.bf16.msra.mxu0 0
    %429 = vmatprep.subr.bf16.mxu0 0
    %430 = vmatpush1.bf16.msra.mxu0 0
    %431 = vmatprep.subr.bf16.mxu0 0
    %432 = vmatpush1.bf16.msra.mxu0 0
    %433 = vmatprep.subr.bf16.mxu0 0
    %434 = vmatpush1.bf16.msra.mxu0 0
    %435 = vmatprep.subr.bf16.mxu0 0
    %436 = vmatpush1.bf16.msra.mxu0 0
    %437 = vmatprep.subr.bf16.mxu0 0
    %438 = vmatpush1.bf16.msra.mxu0 0
    %439 = vmatprep.subr.bf16.mxu0 0
    %440 = vmatpush1.bf16.msra.mxu0 0
    %441 = vmatprep.mubr.bf16.mxu0 0
    %442 = vmatmul.mubr.bf16.gmra.mrb[0].mxu0 %v367
    %v443 = vpop.f32.mrb[0].mxu0
    %v444 = vadd.f32 0.0, %v443
    %v445 = vpop.f32.mrb[0].mxu0
    %v446 = vadd.f32 0.0, %v445
    %v447 = vpop.f32.mrb[0].mxu0
    %v448 = vpop.f32.mrb[0].mxu0
    %449 = vdwg.mxu0
    %v450 = vadd.f32 %v363, %v403
    %v451 = vadd.f32 %v364, %v405
    %v452 = vadd.f32 %v365, %v444
    %v453 = vadd.f32 %v366, %v446
    %v454 = vxor.u32 %v450, 2147483648
    %v455 = vmul.f32 %v454, 1.442695
    %v456 = vpow.pop %v455
    %v457 = vadd.f32 %v456, 1.0
    %v458 = vrcp.pop %v457
    %v459 = vmul.f32 1.0, %v458
    %v460 = vxor.u32 %v451, 2147483648
    %v461 = vmul.f32 %v460, 1.442695
    %v462 = vpow.pop %v461
    %v463 = vadd.f32 %v462, 1.0
    %v464 = vrcp.pop %v463
    %v465 = vmul.f32 1.0, %v464
    %v466 = vtanh.pop %v452
    %v467 = vxor.u32 %v453, 2147483648
    %v468 = vmul.f32 %v467, 1.442695
    %v469 = vpow.pop %v468
    %v470 = vadd.f32 %v469, 1.0
    %v471 = vrcp.pop %v470
    %v472 = vmul.f32 1.0, %v471
    %v473 = vmul.f32 %v465, %v359
    %v474 = vmul.f32 %v459, %v466
    %v475 = vadd.f32 %v473, %v474
    %v476 = vtanh.pop %v475
    %v477 = vmul.f32 %v472, %v476
    %s478 = scalar_lea.vmem [#allocation4], 64
    %v479 = vld [vmem:[%s478] sm:$0xff]
    %v480 = vld [vmem:[%s478 + $0x8] sm:$0xff]
    %v481 = vld [vmem:[%s478 + $0x10] sm:$0xff]
    %v482 = vld [vmem:[%s478 + $0x18] sm:$0xff]
    %v483 = vpack.c.bf16 %v477, %v477
    %484 = vmatprep.subr.bf16.mxu0 %v189
    %485 = vmatpush1.bf16.msra.mxu0 %v188
    %486 = vmatprep.subr.bf16.mxu0 %v193
    %487 = vmatpush1.bf16.msra.mxu0 %v192
    %488 = vmatprep.subr.bf16.mxu0 %v197
    %489 = vmatpush1.bf16.msra.mxu0 %v196
    %490 = vmatprep.subr.bf16.mxu0 %v201
    %491 = vmatpush1.bf16.msra.mxu0 %v200
    %492 = vmatprep.subr.bf16.mxu0 %v205
    %493 = vmatpush1.bf16.msra.mxu0 %v204
    %494 = vmatprep.subr.bf16.mxu0 %v209
    %495 = vmatpush1.bf16.msra.mxu0 %v208
    %496 = vmatprep.subr.bf16.mxu0 %v213
    %497 = vmatpush1.bf16.msra.mxu0 %v212
    %498 = vmatprep.subr.bf16.mxu0 %v217
    %499 = vmatpush1.bf16.msra.mxu0 %v216
    %500 = vmatprep.subr.bf16.mxu0 0
    %501 = vmatpush1.bf16.msra.mxu0 0
    %502 = vmatprep.subr.bf16.mxu0 0
    %503 = vmatpush1.bf16.msra.mxu0 0
    %504 = vmatprep.subr.bf16.mxu0 0
    %505 = vmatpush1.bf16.msra.mxu0 0
    %506 = vmatprep.subr.bf16.mxu0 0
    %507 = vmatpush1.bf16.msra.mxu0 0
    %508 = vmatprep.subr.bf16.mxu0 0
    %509 = vmatpush1.bf16.msra.mxu0 0
    %510 = vmatprep.subr.bf16.mxu0 0
    %511 = vmatpush1.bf16.msra.mxu0 0
    %512 = vmatprep.subr.bf16.mxu0 0
    %513 = vmatpush1.bf16.msra.mxu0 0
    %514 = vmatprep.subr.bf16.mxu0 0
    %515 = vmatpush1.bf16.msra.mxu0 0
    %516 = vmatprep.mubr.bf16.mxu0 0
    %517 = vmatmul.mubr.bf16.gmra.mrb[0].mxu0 %v483
    %v518 = vpop.f32.mrb[0].mxu0
    %v519 = vadd.f32 0.0, %v518
    %v520 = vpop.f32.mrb[0].mxu0
    %v521 = vadd.f32 0.0, %v520
    %v522 = vpop.f32.mrb[0].mxu0
    %v523 = vpop.f32.mrb[0].mxu0
    %524 = vdwg.mxu0
    %525 = vmatprep.subr.bf16.mxu0 %v191
    %526 = vmatpush1.bf16.msra.mxu0 %v190
    %527 = vmatprep.subr.bf16.mxu0 %v195
    %528 = vmatpush1.bf16.msra.mxu0 %v194
    %529 = vmatprep.subr.bf16.mxu0 %v199
    %530 = vmatpush1.bf16.msra.mxu0 %v198
    %531 = vmatprep.subr.bf16.mxu0 %v203
    %532 = vmatpush1.bf16.msra.mxu0 %v202
    %533 = vmatprep.subr.bf16.mxu0 %v207
    %534 = vmatpush1.bf16.msra.mxu0 %v206
    %535 = vmatprep.subr.bf16.mxu0 %v211
    %536 = vmatpush1.bf16.msra.mxu0 %v210
    %537 = vmatprep.subr.bf16.mxu0 %v215
    %538 = vmatpush1.bf16.msra.mxu0 %v214
    %539 = vmatprep.subr.bf16.mxu0 %v219
    %540 = vmatpush1.bf16.msra.mxu0 %v218
    %541 = vmatprep.subr.bf16.mxu0 0
    %542 = vmatpush1.bf16.msra.mxu0 0
    %543 = vmatprep.subr.bf16.mxu0 0
    %544 = vmatpush1.bf16.msra.mxu0 0
    %545 = vmatprep.subr.bf16.mxu0 0
    %546 = vmatpush1.bf16.msra.mxu0 0
    %547 = vmatprep.subr.bf16.mxu0 0
    %548 = vmatpush1.bf16.msra.mxu0 0
    %549 = vmatprep.subr.bf16.mxu0 0
    %550 = vmatpush1.bf16.msra.mxu0 0
    %551 = vmatprep.subr.bf16.mxu0 0
    %552 = vmatpush1.bf16.msra.mxu0 0
    %553 = vmatprep.subr.bf16.mxu0 0
    %554 = vmatpush1.bf16.msra.mxu0 0
    %555 = vmatprep.subr.bf16.mxu0 0
    %556 = vmatpush1.bf16.msra.mxu0 0
    %557 = vmatprep.mubr.bf16.mxu0 0
    %558 = vmatmul.mubr.bf16.gmra.mrb[0].mxu0 %v483
    %v559 = vpop.f32.mrb[0].mxu0
    %v560 = vadd.f32 0.0, %v559
    %v561 = vpop.f32.mrb[0].mxu0
    %v562 = vadd.f32 0.0, %v561
    %v563 = vpop.f32.mrb[0].mxu0
    %v564 = vpop.f32.mrb[0].mxu0
    %565 = vdwg.mxu0
    %v566 = vadd.f32 %v479, %v519
    %v567 = vadd.f32 %v480, %v521
    %v568 = vadd.f32 %v481, %v560
    %v569 = vadd.f32 %v482, %v562
    %v570 = vxor.u32 %v566, 2147483648
    %v571 = vmul.f32 %v570, 1.442695
    %v572 = vpow.pop %v571
    %v573 = vadd.f32 %v572, 1.0
    %v574 = vrcp.pop %v573
    %v575 = vmul.f32 1.0, %v574
    %v576 = vxor.u32 %v567, 2147483648
    %v577 = vmul.f32 %v576, 1.442695
    %v578 = vpow.pop %v577
    %v579 = vadd.f32 %v578, 1.0
    %v580 = vrcp.pop %v579
    %v581 = vmul.f32 1.0, %v580
    %v582 = vtanh.pop %v568
    %v583 = vxor.u32 %v569, 2147483648
    %v584 = vmul.f32 %v583, 1.442695
    %v585 = vpow.pop %v584
    %v586 = vadd.f32 %v585, 1.0
    %v587 = vrcp.pop %v586
    %v588 = vmul.f32 1.0, %v587
    %v589 = vmul.f32 %v581, %v475
    %v590 = vmul.f32 %v575, %v582
    %v591 = vadd.f32 %v589, %v590
    %v592 = vtanh.pop %v591
    %v593 = vmul.f32 %v588, %v592
    %s594 = scalar_lea.vmem [#allocation4], 96
    %v595 = vld [vmem:[%s594] sm:$0xff]
    %v596 = vld [vmem:[%s594 + $0x8] sm:$0xff]
    %v597 = vld [vmem:[%s594 + $0x10] sm:$0xff]
    %v598 = vld [vmem:[%s594 + $0x18] sm:$0xff]
    %v599 = vpack.c.bf16 %v593, %v593
    %600 = vmatprep.subr.bf16.mxu0 %v189
    %601 = vmatpush1.bf16.msra.mxu0 %v188
    %602 = vmatprep.subr.bf16.mxu0 %v193
    %603 = vmatpush1.bf16.msra.mxu0 %v192
    %604 = vmatprep.subr.bf16.mxu0 %v197
    %605 = vmatpush1.bf16.msra.mxu0 %v196
    %606 = vmatprep.subr.bf16.mxu0 %v201
    %607 = vmatpush1.bf16.msra.mxu0 %v200
    %608 = vmatprep.subr.bf16.mxu0 %v205
    %609 = vmatpush1.bf16.msra.mxu0 %v204
    %610 = vmatprep.subr.bf16.mxu0 %v209
    %611 = vmatpush1.bf16.msra.mxu0 %v208
    %612 = vmatprep.subr.bf16.mxu0 %v213
    %613 = vmatpush1.bf16.msra.mxu0 %v212
    %614 = vmatprep.subr.bf16.mxu0 %v217
    %615 = vmatpush1.bf16.msra.mxu0 %v216
    %616 = vmatprep.subr.bf16.mxu0 0
    %617 = vmatpush1.bf16.msra.mxu0 0
    %618 = vmatprep.subr.bf16.mxu0 0
    %619 = vmatpush1.bf16.msra.mxu0 0
    %620 = vmatprep.subr.bf16.mxu0 0
    %621 = vmatpush1.bf16.msra.mxu0 0
    %622 = vmatprep.subr.bf16.mxu0 0
    %623 = vmatpush1.bf16.msra.mxu0 0
    %624 = vmatprep.subr.bf16.mxu0 0
    %625 = vmatpush1.bf16.msra.mxu0 0
    %626 = vmatprep.subr.bf16.mxu0 0
    %627 = vmatpush1.bf16.msra.mxu0 0
    %628 = vmatprep.subr.bf16.mxu0 0
    %629 = vmatpush1.bf16.msra.mxu0 0
    %630 = vmatprep.subr.bf16.mxu0 0
    %631 = vmatpush1.bf16.msra.mxu0 0
    %632 = vmatprep.mubr.bf16.mxu0 0
    %633 = vmatmul.mubr.bf16.gmra.mrb[0].mxu0 %v599
    %v634 = vpop.f32.mrb[0].mxu0
    %v635 = vadd.f32 0.0, %v634
    %v636 = vpop.f32.mrb[0].mxu0
    %v637 = vadd.f32 0.0, %v636
    %v638 = vpop.f32.mrb[0].mxu0
    %v639 = vpop.f32.mrb[0].mxu0
    %640 = vdwg.mxu0
    %641 = vmatprep.subr.bf16.mxu0 %v191
    %642 = vmatpush1.bf16.msra.mxu0 %v190
    %643 = vmatprep.subr.bf16.mxu0 %v195
    %644 = vmatpush1.bf16.msra.mxu0 %v194
    %645 = vmatprep.subr.bf16.mxu0 %v199
    %646 = vmatpush1.bf16.msra.mxu0 %v198
    %647 = vmatprep.subr.bf16.mxu0 %v203
    %648 = vmatpush1.bf16.msra.mxu0 %v202
    %649 = vmatprep.subr.bf16.mxu0 %v207
    %650 = vmatpush1.bf16.msra.mxu0 %v206
    %651 = vmatprep.subr.bf16.mxu0 %v211
    %652 = vmatpush1.bf16.msra.mxu0 %v210
    %653 = vmatprep.subr.bf16.mxu0 %v215
    %654 = vmatpush1.bf16.msra.mxu0 %v214
    %655 = vmatprep.subr.bf16.mxu0 %v219
    %656 = vmatpush1.bf16.msra.mxu0 %v218
    %657 = vmatprep.subr.bf16.mxu0 0
    %658 = vmatpush1.bf16.msra.mxu0 0
    %659 = vmatprep.subr.bf16.mxu0 0
    %660 = vmatpush1.bf16.msra.mxu0 0
    %661 = vmatprep.subr.bf16.mxu0 0
    %662 = vmatpush1.bf16.msra.mxu0 0
    %663 = vmatprep.subr.bf16.mxu0 0
    %664 = vmatpush1.bf16.msra.mxu0 0
    %665 = vmatprep.subr.bf16.mxu0 0
    %666 = vmatpush1.bf16.msra.mxu0 0
    %667 = vmatprep.subr.bf16.mxu0 0
    %668 = vmatpush1.bf16.msra.mxu0 0
    %669 = vmatprep.subr.bf16.mxu0 0
    %670 = vmatpush1.bf16.msra.mxu0 0
    %671 = vmatprep.subr.bf16.mxu0 0
    %672 = vmatpush1.bf16.msra.mxu0 0
    %673 = vmatprep.mubr.bf16.mxu0 0
    %674 = vmatmul.mubr.bf16.gmra.mrb[0].mxu0 %v599
    %v675 = vpop.f32.mrb[0].mxu0
    %v676 = vadd.f32 0.0, %v675
    %v677 = vpop.f32.mrb[0].mxu0
    %v678 = vadd.f32 0.0, %v677
    %v679 = vpop.f32.mrb[0].mxu0
    %v680 = vpop.f32.mrb[0].mxu0
    %681 = vdwg.mxu0
    %v682 = vadd.f32 %v595, %v635
    %v683 = vadd.f32 %v596, %v637
    %v684 = vadd.f32 %v597, %v676
    %v685 = vadd.f32 %v598, %v678
    %v686 = vxor.u32 %v682, 2147483648
    %v687 = vmul.f32 %v686, 1.442695
    %v688 = vpow.pop %v687
    %v689 = vadd.f32 %v688, 1.0
    %v690 = vrcp.pop %v689
    %v691 = vmul.f32 1.0, %v690
    %v692 = vxor.u32 %v683, 2147483648
    %v693 = vmul.f32 %v692, 1.442695
    %v694 = vpow.pop %v693
    %v695 = vadd.f32 %v694, 1.0
    %v696 = vrcp.pop %v695
    %v697 = vmul.f32 1.0, %v696
    %v698 = vtanh.pop %v684
    %v699 = vxor.u32 %v685, 2147483648
    %v700 = vmul.f32 %v699, 1.442695
    %v701 = vpow.pop %v700
    %v702 = vadd.f32 %v701, 1.0
    %v703 = vrcp.pop %v702
    %v704 = vmul.f32 1.0, %v703
    %v705 = vmul.f32 %v697, %v591
    %v706 = vmul.f32 %v691, %v698
    %v707 = vadd.f32 %v705, %v706
    %v708 = vtanh.pop %v707
    %v709 = vmul.f32 %v704, %v708
    %s710 = scalar_lea.vmem [#allocation4], 128
    %v711 = vld [vmem:[%s710] sm:$0xff]
    %v712 = vld [vmem:[%s710 + $0x8] sm:$0xff]
    %v713 = vld [vmem:[%s710 + $0x10] sm:$0xff]
    %v714 = vld [vmem:[%s710 + $0x18] sm:$0xff]
    %v715 = vpack.c.bf16 %v709, %v709
    %716 = vmatprep.subr.bf16.mxu0 %v189
    %717 = vmatpush1.bf16.msra.mxu0 %v188
    %718 = vmatprep.subr.bf16.mxu0 %v193
    %719 = vmatpush1.bf16.msra.mxu0 %v192
    %720 = vmatprep.subr.bf16.mxu0 %v197
    %721 = vmatpush1.bf16.msra.mxu0 %v196
    %722 = vmatprep.subr.bf16.mxu0 %v201
    %723 = vmatpush1.bf16.msra.mxu0 %v200
    %724 = vmatprep.subr.bf16.mxu0 %v205
    %725 = vmatpush1.bf16.msra.mxu0 %v204
    %726 = vmatprep.subr.bf16.mxu0 %v209
    %727 = vmatpush1.bf16.msra.mxu0 %v208
    %728 = vmatprep.subr.bf16.mxu0 %v213
    %729 = vmatpush1.bf16.msra.mxu0 %v212
    %730 = vmatprep.subr.bf16.mxu0 %v217
    %731 = vmatpush1.bf16.msra.mxu0 %v216
    %732 = vmatprep.subr.bf16.mxu0 0
    %733 = vmatpush1.bf16.msra.mxu0 0
    %734 = vmatprep.subr.bf16.mxu0 0
    %735 = vmatpush1.bf16.msra.mxu0 0
    %736 = vmatprep.subr.bf16.mxu0 0
    %737 = vmatpush1.bf16.msra.mxu0 0
    %738 = vmatprep.subr.bf16.mxu0 0
    %739 = vmatpush1.bf16.msra.mxu0 0
    %740 = vmatprep.subr.bf16.mxu0 0
    %741 = vmatpush1.bf16.msra.mxu0 0
    %742 = vmatprep.subr.bf16.mxu0 0
    %743 = vmatpush1.bf16.msra.mxu0 0
    %744 = vmatprep.subr.bf16.mxu0 0
    %745 = vmatpush1.bf16.msra.mxu0 0
    %746 = vmatprep.subr.bf16.mxu0 0
    %747 = vmatpush1.bf16.msra.mxu0 0
    %748 = vmatprep.mubr.bf16.mxu0 0
    %749 = vmatmul.mubr.bf16.gmra.mrb[0].mxu0 %v715
    %v750 = vpop.f32.mrb[0].mxu0
    %v751 = vadd.f32 0.0, %v750
    %v752 = vpop.f32.mrb[0].mxu0
    %v753 = vadd.f32 0.0, %v752
    %v754 = vpop.f32.mrb[0].mxu0
    %v755 = vpop.f32.mrb[0].mxu0
    %756 = vdwg.mxu0
    %757 = vmatprep.subr.bf16.mxu0 %v191
    %758 = vmatpush1.bf16.msra.mxu0 %v190
    %759 = vmatprep.subr.bf16.mxu0 %v195
    %760 = vmatpush1.bf16.msra.mxu0 %v194
    %761 = vmatprep.subr.bf16.mxu0 %v199
    %762 = vmatpush1.bf16.msra.mxu0 %v198
    %763 = vmatprep.subr.bf16.mxu0 %v203
    %764 = vmatpush1.bf16.msra.mxu0 %v202
    %765 = vmatprep.subr.bf16.mxu0 %v207
    %766 = vmatpush1.bf16.msra.mxu0 %v206
    %767 = vmatprep.subr.bf16.mxu0 %v211
    %768 = vmatpush1.bf16.msra.mxu0 %v210
    %769 = vmatprep.subr.bf16.mxu0 %v215
    %770 = vmatpush1.bf16.msra.mxu0 %v214
    %771 = vmatprep.subr.bf16.mxu0 %v219
    %772 = vmatpush1.bf16.msra.mxu0 %v218
    %773 = vmatprep.subr.bf16.mxu0 0
    %774 = vmatpush1.bf16.msra.mxu0 0
    %775 = vmatprep.subr.bf16.mxu0 0
    %776 = vmatpush1.bf16.msra.mxu0 0
    %777 = vmatprep.subr.bf16.mxu0 0
    %778 = vmatpush1.bf16.msra.mxu0 0
    %779 = vmatprep.subr.bf16.mxu0 0
    %780 = vmatpush1.bf16.msra.mxu0 0
    %781 = vmatprep.subr.bf16.mxu0 0
    %782 = vmatpush1.bf16.msra.mxu0 0
    %783 = vmatprep.subr.bf16.mxu0 0
    %784 = vmatpush1.bf16.msra.mxu0 0
    %785 = vmatprep.subr.bf16.mxu0 0
    %786 = vmatpush1.bf16.msra.mxu0 0
    %787 = vmatprep.subr.bf16.mxu0 0
    %788 = vmatpush1.bf16.msra.mxu0 0
    %789 = vmatprep.mubr.bf16.mxu0 0
    %790 = vmatmul.mubr.bf16.gmra.mrb[0].mxu0 %v715
    %v791 = vpop.f32.mrb[0].mxu0
    %v792 = vadd.f32 0.0, %v791
    %v793 = vpop.f32.mrb[0].mxu0
    %v794 = vadd.f32 0.0, %v793
    %v795 = vpop.f32.mrb[0].mxu0
    %v796 = vpop.f32.mrb[0].mxu0
    %797 = vdwg.mxu0
    %v798 = vadd.f32 %v711, %v751
    %v799 = vadd.f32 %v712, %v753
    %v800 = vadd.f32 %v713, %v792
    %v801 = vadd.f32 %v714, %v794
    %v802 = vxor.u32 %v798, 2147483648
    %v803 = vmul.f32 %v802, 1.442695
    %v804 = vpow.pop %v803
    %v805 = vadd.f32 %v804, 1.0
    %v806 = vrcp.pop %v805
    %v807 = vmul.f32 1.0, %v806
    %v808 = vxor.u32 %v799, 2147483648
    %v809 = vmul.f32 %v808, 1.442695
    %v810 = vpow.pop %v809
    %v811 = vadd.f32 %v810, 1.0
    %v812 = vrcp.pop %v811
    %v813 = vmul.f32 1.0, %v812
    %v814 = vtanh.pop %v800
    %v815 = vxor.u32 %v801, 2147483648
    %v816 = vmul.f32 %v815, 1.442695
    %v817 = vpow.pop %v816
    %v818 = vadd.f32 %v817, 1.0
    %v819 = vrcp.pop %v818
    %v820 = vmul.f32 1.0, %v819
    %v821 = vmul.f32 %v813, %v707
    %v822 = vmul.f32 %v807, %v814
    %v823 = vadd.f32 %v821, %v822
    %v824 = vtanh.pop %v823
    %v825 = vmul.f32 %v820, %v824
    %s826 = scalar_lea.vmem [#allocation4], 160
    %v827 = vld [vmem:[%s826] sm:$0xff]
    %v828 = vld [vmem:[%s826 + $0x8] sm:$0xff]
    %v829 = vld [vmem:[%s826 + $0x10] sm:$0xff]
    %v830 = vld [vmem:[%s826 + $0x18] sm:$0xff]
    %v831 = vpack.c.bf16 %v825, %v825
    %832 = vmatprep.subr.bf16.mxu0 %v189
    %833 = vmatpush1.bf16.msra.mxu0 %v188
    %834 = vmatprep.subr.bf16.mxu0 %v193
    %835 = vmatpush1.bf16.msra.mxu0 %v192
    %836 = vmatprep.subr.bf16.mxu0 %v197
    %837 = vmatpush1.bf16.msra.mxu0 %v196
    %838 = vmatprep.subr.bf16.mxu0 %v201
    %839 = vmatpush1.bf16.msra.mxu0 %v200
    %840 = vmatprep.subr.bf16.mxu0 %v205
    %841 = vmatpush1.bf16.msra.mxu0 %v204
    %842 = vmatprep.subr.bf16.mxu0 %v209
    %843 = vmatpush1.bf16.msra.mxu0 %v208
    %844 = vmatprep.subr.bf16.mxu0 %v213
    %845 = vmatpush1.bf16.msra.mxu0 %v212
    %846 = vmatprep.subr.bf16.mxu0 %v217
    %847 = vmatpush1.bf16.msra.mxu0 %v216
    %848 = vmatprep.subr.bf16.mxu0 0
    %849 = vmatpush1.bf16.msra.mxu0 0
    %850 = vmatprep.subr.bf16.mxu0 0
    %851 = vmatpush1.bf16.msra.mxu0 0
    %852 = vmatprep.subr.bf16.mxu0 0
    %853 = vmatpush1.bf16.msra.mxu0 0
    %854 = vmatprep.subr.bf16.mxu0 0
    %855 = vmatpush1.bf16.msra.mxu0 0
    %856 = vmatprep.subr.bf16.mxu0 0
    %857 = vmatpush1.bf16.msra.mxu0 0
    %858 = vmatprep.subr.bf16.mxu0 0
    %859 = vmatpush1.bf16.msra.mxu0 0
    %860 = vmatprep.subr.bf16.mxu0 0
    %861 = vmatpush1.bf16.msra.mxu0 0
    %862 = vmatprep.subr.bf16.mxu0 0
    %863 = vmatpush1.bf16.msra.mxu0 0
    %864 = vmatprep.mubr.bf16.mxu0 0
    %865 = vmatmul.mubr.bf16.gmra.mrb[0].mxu0 %v831
    %v866 = vpop.f32.mrb[0].mxu0
    %v867 = vadd.f32 0.0, %v866
    %v868 = vpop.f32.mrb[0].mxu0
    %v869 = vadd.f32 0.0, %v868
    %v870 = vpop.f32.mrb[0].mxu0
    %v871 = vpop.f32.mrb[0].mxu0
    %872 = vdwg.mxu0
    %873 = vmatprep.subr.bf16.mxu0 %v191
    %874 = vmatpush1.bf16.msra.mxu0 %v190
    %875 = vmatprep.subr.bf16.mxu0 %v195
    %876 = vmatpush1.bf16.msra.mxu0 %v194
    %877 = vmatprep.subr.bf16.mxu0 %v199
    %878 = vmatpush1.bf16.msra.mxu0 %v198
    %879 = vmatprep.subr.bf16.mxu0 %v203
    %880 = vmatpush1.bf16.msra.mxu0 %v202
    %881 = vmatprep.subr.bf16.mxu0 %v207
    %882 = vmatpush1.bf16.msra.mxu0 %v206
    %883 = vmatprep.subr.bf16.mxu0 %v211
    %884 = vmatpush1.bf16.msra.mxu0 %v210
    %885 = vmatprep.subr.bf16.mxu0 %v215
    %886 = vmatpush1.bf16.msra.mxu0 %v214
    %887 = vmatprep.subr.bf16.mxu0 %v219
    %888 = vmatpush1.bf16.msra.mxu0 %v218
    %889 = vmatprep.subr.bf16.mxu0 0
    %890 = vmatpush1.bf16.msra.mxu0 0
    %891 = vmatprep.subr.bf16.mxu0 0
    %892 = vmatpush1.bf16.msra.mxu0 0
    %893 = vmatprep.subr.bf16.mxu0 0
    %894 = vmatpush1.bf16.msra.mxu0 0
    %895 = vmatprep.subr.bf16.mxu0 0
    %896 = vmatpush1.bf16.msra.mxu0 0
    %897 = vmatprep.subr.bf16.mxu0 0
    %898 = vmatpush1.bf16.msra.mxu0 0
    %899 = vmatprep.subr.bf16.mxu0 0
    %900 = vmatpush1.bf16.msra.mxu0 0
    %901 = vmatprep.subr.bf16.mxu0 0
    %902 = vmatpush1.bf16.msra.mxu0 0
    %903 = vmatprep.subr.bf16.mxu0 0
    %904 = vmatpush1.bf16.msra.mxu0 0
    %905 = vmatprep.mubr.bf16.mxu0 0
    %906 = vmatmul.mubr.bf16.gmra.mrb[0].mxu0 %v831
    %v907 = vpop.f32.mrb[0].mxu0
    %v908 = vadd.f32 0.0, %v907
    %v909 = vpop.f32.mrb[0].mxu0
    %v910 = vadd.f32 0.0, %v909
    %v911 = vpop.f32.mrb[0].mxu0
    %v912 = vpop.f32.mrb[0].mxu0
    %913 = vdwg.mxu0
    %v914 = vadd.f32 %v827, %v867
    %v915 = vadd.f32 %v828, %v869
    %v916 = vadd.f32 %v829, %v908
    %v917 = vadd.f32 %v830, %v910
    %v918 = vxor.u32 %v914, 2147483648
    %v919 = vmul.f32 %v918, 1.442695
    %v920 = vpow.pop %v919
    %v921 = vadd.f32 %v920, 1.0
    %v922 = vrcp.pop %v921
    %v923 = vmul.f32 1.0, %v922
    %v924 = vxor.u32 %v915, 2147483648
    %v925 = vmul.f32 %v924, 1.442695
    %v926 = vpow.pop %v925
    %v927 = vadd.f32 %v926, 1.0
    %v928 = vrcp.pop %v927
    %v929 = vmul.f32 1.0, %v928
    %v930 = vtanh.pop %v916
    %v931 = vxor.u32 %v917, 2147483648
    %v932 = vmul.f32 %v931, 1.442695
    %v933 = vpow.pop %v932
    %v934 = vadd.f32 %v933, 1.0
    %v935 = vrcp.pop %v934
    %v936 = vmul.f32 1.0, %v935
    %v937 = vmul.f32 %v929, %v823
    %v938 = vmul.f32 %v923, %v930
    %v939 = vadd.f32 %v937, %v938
    %v940 = vtanh.pop %v939
    %v941 = vmul.f32 %v936, %v940
    %s942 = scalar_lea.vmem [#allocation4], 192
    %v943 = vld [vmem:[%s942] sm:$0xff]
    %v944 = vld [vmem:[%s942 + $0x8] sm:$0xff]
    %v945 = vld [vmem:[%s942 + $0x10] sm:$0xff]
    %v946 = vld [vmem:[%s942 + $0x18] sm:$0xff]
    %v947 = vpack.c.bf16 %v941, %v941
    %948 = vmatprep.subr.bf16.mxu0 %v189
    %949 = vmatpush1.bf16.msra.mxu0 %v188
    %950 = vmatprep.subr.bf16.mxu0 %v193
    %951 = vmatpush1.bf16.msra.mxu0 %v192
    %952 = vmatprep.subr.bf16.mxu0 %v197
    %953 = vmatpush1.bf16.msra.mxu0 %v196
    %954 = vmatprep.subr.bf16.mxu0 %v201
    %955 = vmatpush1.bf16.msra.mxu0 %v200
    %956 = vmatprep.subr.bf16.mxu0 %v205
    %957 = vmatpush1.bf16.msra.mxu0 %v204
    %958 = vmatprep.subr.bf16.mxu0 %v209
    %959 = vmatpush1.bf16.msra.mxu0 %v208
    %960 = vmatprep.subr.bf16.mxu0 %v213
    %961 = vmatpush1.bf16.msra.mxu0 %v212
    %962 = vmatprep.subr.bf16.mxu0 %v217
    %963 = vmatpush1.bf16.msra.mxu0 %v216
    %964 = vmatprep.subr.bf16.mxu0 0
    %965 = vmatpush1.bf16.msra.mxu0 0
    %966 = vmatprep.subr.bf16.mxu0 0
    %967 = vmatpush1.bf16.msra.mxu0 0
    %968 = vmatprep.subr.bf16.mxu0 0
    %969 = vmatpush1.bf16.msra.mxu0 0
    %970 = vmatprep.subr.bf16.mxu0 0
    %971 = vmatpush1.bf16.msra.mxu0 0
    %972 = vmatprep.subr.bf16.mxu0 0
    %973 = vmatpush1.bf16.msra.mxu0 0
    %974 = vmatprep.subr.bf16.mxu0 0
    %975 = vmatpush1.bf16.msra.mxu0 0
    %976 = vmatprep.subr.bf16.mxu0 0
    %977 = vmatpush1.bf16.msra.mxu0 0
    %978 = vmatprep.subr.bf16.mxu0 0
    %979 = vmatpush1.bf16.msra.mxu0 0
    %980 = vmatprep.mubr.bf16.mxu0 0
    %981 = vmatmul.mubr.bf16.gmra.mrb[0].mxu0 %v947
    %v982 = vpop.f32.mrb[0].mxu0
    %v983 = vadd.f32 0.0, %v982
    %v984 = vpop.f32.mrb[0].mxu0
    %v985 = vadd.f32 0.0, %v984
    %v986 = vpop.f32.mrb[0].mxu0
    %v987 = vpop.f32.mrb[0].mxu0
    %988 = vdwg.mxu0
    %989 = vmatprep.subr.bf16.mxu0 %v191
    %990 = vmatpush1.bf16.msra.mxu0 %v190
    %991 = vmatprep.subr.bf16.mxu0 %v195
    %992 = vmatpush1.bf16.msra.mxu0 %v194
    %993 = vmatprep.subr.bf16.mxu0 %v199
    %994 = vmatpush1.bf16.msra.mxu0 %v198
    %995 = vmatprep.subr.bf16.mxu0 %v203
    %996 = vmatpush1.bf16.msra.mxu0 %v202
    %997 = vmatprep.subr.bf16.mxu0 %v207
    %998 = vmatpush1.bf16.msra.mxu0 %v206
    %999 = vmatprep.subr.bf16.mxu0 %v211
    %1000 = vmatpush1.bf16.msra.mxu0 %v210
    %1001 = vmatprep.subr.bf16.mxu0 %v215
    %1002 = vmatpush1.bf16.msra.mxu0 %v214
    %1003 = vmatprep.subr.bf16.mxu0 %v219
    %1004 = vmatpush1.bf16.msra.mxu0 %v218
    %1005 = vmatprep.subr.bf16.mxu0 0
    %1006 = vmatpush1.bf16.msra.mxu0 0
    %1007 = vmatprep.subr.bf16.mxu0 0
    %1008 = vmatpush1.bf16.msra.mxu0 0
    %1009 = vmatprep.subr.bf16.mxu0 0
    %1010 = vmatpush1.bf16.msra.mxu0 0
    %1011 = vmatprep.subr.bf16.mxu0 0
    %1012 = vmatpush1.bf16.msra.mxu0 0
    %1013 = vmatprep.subr.bf16.mxu0 0
    %1014 = vmatpush1.bf16.msra.mxu0 0
    %1015 = vmatprep.subr.bf16.mxu0 0
    %1016 = vmatpush1.bf16.msra.mxu0 0
    %1017 = vmatprep.subr.bf16.mxu0 0
    %1018 = vmatpush1.bf16.msra.mxu0 0
    %1019 = vmatprep.subr.bf16.mxu0 0
    %1020 = vmatpush1.bf16.msra.mxu0 0
    %1021 = vmatprep.mubr.bf16.mxu0 0
    %1022 = vmatmul.mubr.bf16.gmra.mrb[0].mxu0 %v947
    %v1023 = vpop.f32.mrb[0].mxu0
    %v1024 = vadd.f32 0.0, %v1023
    %v1025 = vpop.f32.mrb[0].mxu0
    %v1026 = vadd.f32 0.0, %v1025
    %v1027 = vpop.f32.mrb[0].mxu0
    %v1028 = vpop.f32.mrb[0].mxu0
    %1029 = vdwg.mxu0
    %v1030 = vadd.f32 %v943, %v983
    %v1031 = vadd.f32 %v944, %v985
    %v1032 = vadd.f32 %v945, %v1024
    %v1033 = vadd.f32 %v946, %v1026
    %v1034 = vxor.u32 %v1030, 2147483648
    %v1035 = vmul.f32 %v1034, 1.442695
    %v1036 = vpow.pop %v1035
    %v1037 = vadd.f32 %v1036, 1.0
    %v1038 = vrcp.pop %v1037
    %v1039 = vmul.f32 1.0, %v1038
    %v1040 = vxor.u32 %v1031, 2147483648
    %v1041 = vmul.f32 %v1040, 1.442695
    %v1042 = vpow.pop %v1041
    %v1043 = vadd.f32 %v1042, 1.0
    %v1044 = vrcp.pop %v1043
    %v1045 = vmul.f32 1.0, %v1044
    %v1046 = vtanh.pop %v1032
    %v1047 = vxor.u32 %v1033, 2147483648
    %v1048 = vmul.f32 %v1047, 1.442695
    %v1049 = vpow.pop %v1048
    %v1050 = vadd.f32 %v1049, 1.0
    %v1051 = vrcp.pop %v1050
    %v1052 = vmul.f32 1.0, %v1051
    %v1053 = vmul.f32 %v1045, %v939
    %v1054 = vmul.f32 %v1039, %v1046
    %v1055 = vadd.f32 %v1053, %v1054
    %v1056 = vtanh.pop %v1055
    %v1057 = vmul.f32 %v1052, %v1056
    %s1058 = scalar_lea.vmem [#allocation4], 224
    %v1059 = vld [vmem:[%s1058] sm:$0xff]
    %v1060 = vld [vmem:[%s1058 + $0x8] sm:$0xff]
    %v1061 = vld [vmem:[%s1058 + $0x10] sm:$0xff]
    %v1062 = vld [vmem:[%s1058 + $0x18] sm:$0xff]
    %v1063 = vpack.c.bf16 %v1057, %v1057
    %1064 = vmatprep.subr.bf16.mxu0 %v189
    %1065 = vmatpush1.bf16.msra.mxu0 %v188
    %1066 = vmatprep.subr.bf16.mxu0 %v193
    %1067 = vmatpush1.bf16.msra.mxu0 %v192
    %1068 = vmatprep.subr.bf16.mxu0 %v197
    %1069 = vmatpush1.bf16.msra.mxu0 %v196
    %1070 = vmatprep.subr.bf16.mxu0 %v201
    %1071 = vmatpush1.bf16.msra.mxu0 %v200
    %1072 = vmatprep.subr.bf16.mxu0 %v205
    %1073 = vmatpush1.bf16.msra.mxu0 %v204
    %1074 = vmatprep.subr.bf16.mxu0 %v209
    %1075 = vmatpush1.bf16.msra.mxu0 %v208
    %1076 = vmatprep.subr.bf16.mxu0 %v213
    %1077 = vmatpush1.bf16.msra.mxu0 %v212
    %1078 = vmatprep.subr.bf16.mxu0 %v217
    %1079 = vmatpush1.bf16.msra.mxu0 %v216
    %1080 = vmatprep.subr.bf16.mxu0 0
    %1081 = vmatpush1.bf16.msra.mxu0 0
    %1082 = vmatprep.subr.bf16.mxu0 0
    %1083 = vmatpush1.bf16.msra.mxu0 0
    %1084 = vmatprep.subr.bf16.mxu0 0
    %1085 = vmatpush1.bf16.msra.mxu0 0
    %1086 = vmatprep.subr.bf16.mxu0 0
    %1087 = vmatpush1.bf16.msra.mxu0 0
    %1088 = vmatprep.subr.bf16.mxu0 0
    %1089 = vmatpush1.bf16.msra.mxu0 0
    %1090 = vmatprep.subr.bf16.mxu0 0
    %1091 = vmatpush1.bf16.msra.mxu0 0
    %1092 = vmatprep.subr.bf16.mxu0 0
    %1093 = vmatpush1.bf16.msra.mxu0 0
    %1094 = vmatprep.subr.bf16.mxu0 0
    %1095 = vmatpush1.bf16.msra.mxu0 0
    %1096 = vmatprep.mubr.bf16.mxu0 0
    %1097 = vmatmul.mubr.bf16.gmra.mrb[0].mxu0 %v1063
    %v1098 = vpop.f32.mrb[0].mxu0
    %v1099 = vadd.f32 0.0, %v1098
    %v1100 = vpop.f32.mrb[0].mxu0
    %v1101 = vadd.f32 0.0, %v1100
    %v1102 = vpop.f32.mrb[0].mxu0
    %v1103 = vpop.f32.mrb[0].mxu0
    %1104 = vdwg.mxu0
    %1105 = vmatprep.subr.bf16.mxu0 %v191
    %1106 = vmatpush1.bf16.msra.mxu0 %v190
    %1107 = vmatprep.subr.bf16.mxu0 %v195
    %1108 = vmatpush1.bf16.msra.mxu0 %v194
    %1109 = vmatprep.subr.bf16.mxu0 %v199
    %1110 = vmatpush1.bf16.msra.mxu0 %v198
    %1111 = vmatprep.subr.bf16.mxu0 %v203
    %1112 = vmatpush1.bf16.msra.mxu0 %v202
    %1113 = vmatprep.subr.bf16.mxu0 %v207
    %1114 = vmatpush1.bf16.msra.mxu0 %v206
    %1115 = vmatprep.subr.bf16.mxu0 %v211
    %1116 = vmatpush1.bf16.msra.mxu0 %v210
    %1117 = vmatprep.subr.bf16.mxu0 %v215
    %1118 = vmatpush1.bf16.msra.mxu0 %v214
    %1119 = vmatprep.subr.bf16.mxu0 %v219
    %1120 = vmatpush1.bf16.msra.mxu0 %v218
    %1121 = vmatprep.subr.bf16.mxu0 0
    %1122 = vmatpush1.bf16.msra.mxu0 0
    %1123 = vmatprep.subr.bf16.mxu0 0
    %1124 = vmatpush1.bf16.msra.mxu0 0
    %1125 = vmatprep.subr.bf16.mxu0 0
    %1126 = vmatpush1.bf16.msra.mxu0 0
    %1127 = vmatprep.subr.bf16.mxu0 0
    %1128 = vmatpush1.bf16.msra.mxu0 0
    %1129 = vmatprep.subr.bf16.mxu0 0
    %1130 = vmatpush1.bf16.msra.mxu0 0
    %1131 = vmatprep.subr.bf16.mxu0 0
    %1132 = vmatpush1.bf16.msra.mxu0 0
    %1133 = vmatprep.subr.bf16.mxu0 0
    %1134 = vmatpush1.bf16.msra.mxu0 0
    %1135 = vmatprep.subr.bf16.mxu0 0
    %1136 = vmatpush1.bf16.msra.mxu0 0
    %1137 = vmatprep.mubr.bf16.mxu0 0
    %1138 = vmatmul.mubr.bf16.gmra.mrb[0].mxu0 %v1063
    %v1139 = vpop.f32.mrb[0].mxu0
    %v1140 = vadd.f32 0.0, %v1139
    %v1141 = vpop.f32.mrb[0].mxu0
    %v1142 = vadd.f32 0.0, %v1141
    %v1143 = vpop.f32.mrb[0].mxu0
    %v1144 = vpop.f32.mrb[0].mxu0
    %1145 = vdwg.mxu0
    %v1146 = vadd.f32 %v1059, %v1099
    %v1147 = vadd.f32 %v1060, %v1101
    %v1148 = vadd.f32 %v1061, %v1140
    %v1149 = vadd.f32 %v1062, %v1142
    %v1150 = vxor.u32 %v1146, 2147483648
    %v1151 = vmul.f32 %v1150, 1.442695
    %v1152 = vpow.pop %v1151
    %v1153 = vadd.f32 %v1152, 1.0
    %v1154 = vrcp.pop %v1153
    %v1155 = vmul.f32 1.0, %v1154
    %v1156 = vxor.u32 %v1147, 2147483648
    %v1157 = vmul.f32 %v1156, 1.442695
    %v1158 = vpow.pop %v1157
    %v1159 = vadd.f32 %v1158, 1.0
    %v1160 = vrcp.pop %v1159
    %v1161 = vmul.f32 1.0, %v1160
    %v1162 = vtanh.pop %v1148
    %v1163 = vxor.u32 %v1149, 2147483648
    %v1164 = vmul.f32 %v1163, 1.442695
    %v1165 = vpow.pop %v1164
    %v1166 = vadd.f32 %v1165, 1.0
    %v1167 = vrcp.pop %v1166
    %v1168 = vmul.f32 1.0, %v1167
    %v1169 = vmul.f32 %v1161, %v1055
    %v1170 = vmul.f32 %v1155, %v1162
    %v1171 = vadd.f32 %v1169, %v1170
    %v1172 = vtanh.pop %v1171
    %v1173 = vmul.f32 %v1168, %v1172
    %1174 = vst [vmem:[#allocation2] sm:$0xff] %v1173
    %1175 = vst [vmem:[#allocation3] sm:$0xff] %v1171
    // Predicated region
    $region30: #{tpu_custom_call.1} parent=1 // pred_check
      %p1176 = pneg %p47
    $region31: #{tpu_custom_call.1} parent=1 // pred_check_branch
      %1178 = sbr.rel (%p1176) target = $region33
    $region32: #{tpu_custom_call.1} parent=1 // pred_region
      %v1179 = vld [vmem:[%s2] sm:$0x1]
      %v1181 = vlaneseq
      %v1182 = vshrl.u32 %v1181, 7
      %v1183 = vsub.s32 0, %v1182
      %v1184 = vrot.slane %v1179, %v1183
      %v1186 = vmul.f32 %v1173, %v1184
      %1187 = vadd.xlane.f32.xlu0 %v1186
      %v1188 = vpop.xlane.xlu0 %1187
      %v1189 = vld [vmem:[%s3] sm:$0x1]
      %v1191 = vlaneseq
      %v1192 = vshrl.u32 %v1191, 7
      %v1193 = vsub.s32 0, %v1192
      %v1194 = vrot.slane %v1189, %v1193
      %v1196 = vadd.f32 %v1188, %v1194
      %v1197 = vxor.u32 %v1196, 2147483648
      %v1198 = vmul.f32 %v1197, 1.442695
      %v1199 = vpow.pop %v1198
      %v1200 = vadd.f32 %v1199, 1.0
      %v1201 = vrcp.pop %v1200
      %v1202 = vmul.f32 1.0, %v1201
      %1203 = vst [vmem:[#allocation9] sm:$0xff] %v1202
    $region33: #{tpu_custom_call.1} parent=1 // pred_fallthru
      _
    // Predicated region
    $region34: #{tpu_custom_call.1} parent=1 // pred_check
      _
    $region35: #{tpu_custom_call.1} parent=1 // pred_check_branch
      %1205 = sbr.rel (0) target = $region37
    $region36: #{tpu_custom_call.1} parent=1 // pred_region
      %s1207 = ssub.s32 128, 128
      %1208 = vsyncadd [#allocation6], %s1207
      %s1210 = sshll.u32 [#allocation9], 4
      %s1211 = int_to_ptr.vmem [resolvable:$true] %s1210
      %1213 = dma.vmem_to_hbm [thread:$0]  %s1211, 128, %s4, [#allocation6]
    $region37: #{tpu_custom_call.1} parent=1 // pred_fallthru
      _
    // Predicated region
    $region38: #{tpu_custom_call.1} parent=1 // pred_check
      _
    $region39: #{tpu_custom_call.1} parent=1 // pred_check_branch
      %1215 = sbr.rel (0) target = $region41
    $region40: #{tpu_custom_call.1} parent=1 // pred_region
      %1216 = dma.done [#allocation6], 128
    $region41: #{tpu_custom_call.1} parent=1 // pred_fallthru
      _
    %1217 = vsyncpa [#allocation5], 1
    %1218 = vsyncpa [#allocation8], 1
    %1219 = vsyncpa [#allocation6], 1

</llo_original>
